<compile_context>
chip_gen: v5e
topology: v5e:2x2
jax: 0.10.0
libtpu: 0.0.40
codegen_flags: <defaults>
</compile_context>

<pallas_src>
import math
from functools import partial

import jax
import jax.numpy as jnp
from jax import lax
from jax.experimental import pallas as pl
from jax.experimental.pallas import tpu as pltpu


# ---------------------------------------------------------------------------
# Kernels (lane-dense: output tile is (TN, TM) so TM sits on the 128 lanes)
# ---------------------------------------------------------------------------
def _linear_scale_kernel_single_k(x_ref, w_ref, o_ref, *, scale):
    """Full-K stripe, no reduction axis -> write the output tile directly.

    x_ref: (TM, K)   rows of the flattened input (K lane-dense)
    w_ref: (TN, K)   weight rows in PyTorch (out, in) layout
    o_ref: (TN, TM)  lane-dense output tile
    """
    o_ref[...] = (
        lax.dot_general(
            w_ref[...],
            x_ref[...],
            dimension_numbers=(((1,), (1,)), ((), ())),   # W @ X^T
            preferred_element_type=jnp.float32,
        )
        * scale
    ).astype(o_ref.dtype)


def _linear_scale_kernel_multi_k(x_ref, w_ref, o_ref, acc_ref, *, scale, tk, w_slice):
    """K-tiled reduction with an f32 (TN, TM) accumulator resident across k.

    x_ref:   (TM, TK)
    w_ref:   (out_ch, K_pad) if w_slice (resident weight, sliced in-kernel)
             else (TN, TK)   (streamed weight block)
    o_ref:   (TN, TM)   written on the last K step
    acc_ref: (TN, TM)   f32 scratch
    """
    k = pl.program_id(2)

    @pl.when(k == 0)
    def _():
        acc_ref[...] = jnp.zeros_like(acc_ref)

    if w_slice:
        # tk is always a multiple of 128 on this path -> aligned lane slice.
        w = w_ref[:, pl.ds(pl.multiple_of(k * tk, 128), tk)]
    else:
        w = w_ref[...]

    acc_ref[...] += lax.dot_general(
        w,
        x_ref[...],
        dimension_numbers=(((1,), (1,)), ((), ())),       # W_k @ X_k^T
        preferred_element_type=jnp.float32,
    )

    @pl.when(k == pl.num_programs(2) - 1)
    def _():
        o_ref[...] = (acc_ref[...] * scale).astype(o_ref.dtype)


# ---------------------------------------------------------------------------
# Tiling helpers
# ---------------------------------------------------------------------------
def _round_up(x, n):
    return ((x + n - 1) // n) * n


def _vmem_limit_bytes():
    """Generation-aware VMEM budget (v5e/v6e: 128 MiB physical, v7x: 64 MiB)."""
    try:
        cap = int(pltpu.get_tpu_info().vmem_capacity_bytes)
    except Exception:
        cap = 64 * 1024 * 1024  # conservative fallback: v7x-sized VMEM
    return min(cap // 2, 64 * 1024 * 1024)


def _pick_tk(k):
    """Return (TK, K_padded).  TK always divides K_padded exactly, so the
    K-reduction never accumulates garbage; if no clean tile divides K we
    zero-pad K on the wrapper side (zeros contribute nothing to the dot)."""
    if k <= 1024:
        return k, k                      # single full-K stripe -> no reduction axis
    for t in (1024, 512, 256, 128):
        if k % t == 0:
            return t, k
    kp = _round_up(k, 256)
    return 256, kp


def _pick_tn(n):
    # TN is the sublane dim of the (TN, TM) output tile: full dim or a
    # multiple of 8.  Tile only for very wide Linears.
    return n if n <= 512 else 256


def _pick_tm(m, tm_cap):
    """TM is the lane dim of the (TN, TM) output tile -> multiple of 128
    (or the full M).  Prefer an even number of M steps so v7x's two
    TensorCores get balanced work; big tiles amortize the ~0.35 us/step
    pipeline overhead on v5e/v6e."""
    tm_cap = max(128, (int(tm_cap) // 128) * 128)
    if m <= 256:
        return m                          # single full block (always legal)
    steps = 2
    while True:
        tm = _round_up((m + steps - 1) // steps, 128)
        if tm <= tm_cap:
            return tm
        steps += 2


# ---------------------------------------------------------------------------
# Wrapper: Embedding_module.forward
# ---------------------------------------------------------------------------
def embedding_module_forward(x, weight):
    """Embedding_module.forward: Linear(in_ch->out_ch, bias=False)(x) / sqrt(out_ch).

    x:      [..., in_ch]     channels-last, like torch.nn.Linear
    weight: [out_ch, in_ch]  PyTorch nn.Linear layout (never transposed in HBM)
    """
    out_ch, in_ch = weight.shape
    lead_shape = x.shape[:-1]
    M = math.prod(lead_shape) if lead_shape else 1

    scale = 1.0 / math.sqrt(out_ch)
    itemsize = jnp.dtype(x.dtype).itemsize
    x2d = x.reshape(M, in_ch)

    # --- K tiling (pad K if no clean tile divides it) -----------------------
    TK, Kp = _pick_tk(in_ch)
    if Kp != in_ch:
        x2d = jnp.pad(x2d, ((0, 0), (0, Kp - in_ch)))
        weight = jnp.pad(weight, ((0, 0), (0, Kp - in_ch)))
    num_k = Kp // TK

    # --- N tiling (only for very wide general Linears) ----------------------
    TN = _pick_tn(out_ch)
    num_n = pl.cdiv(out_ch, TN)

    # Keep the (small) weight fully resident in VMEM on the deep-K path so it
    # is DMA'd once instead of re-streamed for every M tile.
    w_resident = (num_k > 1) and (num_n == 1) and (out_ch * Kp * itemsize <= 4 << 20)

    # --- M tiling from an explicit VMEM budget -------------------------------
    vmem_limit = _vmem_limit_bytes()
    budget = vmem_limit // 2                      # headroom for double buffering etc.
    w_vmem = out_ch * Kp * itemsize if w_resident else 2 * TN * TK * itemsize
    per_tm = 2 * TK * itemsize + 2 * TN * itemsize + (TN * 4 if num_k > 1 else 0)
    tm_cap = max(1, (budget - w_vmem) // per_tm)
    TM = _pick_tm(M, tm_cap)
    num_m = pl.cdiv(M, TM)

    cost = pl.CostEstimate(
        flops=2 * M * in_ch * out_ch,
        bytes_accessed=itemsize * (M * in_ch + out_ch * in_ch + M * out_ch),
        transcendentals=0,
    )

    if num_k == 1:
        grid = (num_m, num_n)
        in_specs = [
            pl.BlockSpec((TM, Kp), lambda i, j: (i, 0)),
            pl.BlockSpec((TN, Kp), lambda i, j: (j, 0)),
        ]
        out_specs = pl.BlockSpec((TN, TM), lambda i, j: (j, i))
        scratch = []
        kernel = partial(_linear_scale_kernel_single_k, scale=scale)
        dims = ("parallel", "parallel")
    else:
        grid = (num_m, num_n, num_k)
        if w_resident:
            w_spec = pl.BlockSpec((out_ch, Kp), lambda i, j, k: (0, 0))
        else:
            w_spec = pl.BlockSpec((TN, TK), lambda i, j, k: (j, k))
        in_specs = [
            pl.BlockSpec((TM, TK), lambda i, j, k: (i, k)),
            w_spec,
        ]
        out_specs = pl.BlockSpec((TN, TM), lambda i, j, k: (j, i))
        scratch = [pltpu.VMEM((TN, TM), jnp.float32)]
        kernel = partial(
            _linear_scale_kernel_multi_k, scale=scale, tk=TK, w_slice=w_resident
        )
        dims = ("parallel", "parallel", "arbitrary")

    # Lane-dense output: (out_ch, M); transposed back to (M, out_ch) in XLA
    # (out_ch * M * 4 bytes -- noise next to the x stream).
    out_t = pl.pallas_call(
        kernel,
        out_shape=jax.ShapeDtypeStruct((out_ch, M), x.dtype),
        grid_spec=pltpu.PrefetchScalarGridSpec(
            num_scalar_prefetch=0,
            grid=grid,
            in_specs=in_specs,
            out_specs=out_specs,
            scratch_shapes=scratch,
        ),
        compiler_params=pltpu.CompilerParams(
            dimension_semantics=dims,
            vmem_limit_bytes=int(vmem_limit),
        ),
        cost_estimate=cost,
    )(x2d, weight)

    return out_t.T.reshape(*lead_shape, out_ch)


# ---------------------------------------------------------------------------
# Self-test
# ---------------------------------------------------------------------------
if __name__ == "__main__":
    key = jax.random.PRNGKey(0)
    ks = jax.random.split(key, 8)

    def run_case(lead_shape, in_ch, out_ch, kx, kw):
        x = jax.random.normal(kx, (*lead_shape, in_ch), dtype=jnp.float32)
        bound = 1.0 / math.sqrt(in_ch)  # torch.nn.Linear default init range
        w = jax.random.uniform(
            kw, (out_ch, in_ch), minval=-bound, maxval=bound, dtype=jnp.float32
        )
        out = jax.block_until_ready(embedding_module_forward(x, w))
        ref = (
            jnp.einsum("...k,nk->...n", x, w, precision=jax.lax.Precision.HIGHEST)
            / math.sqrt(out_ch)
        )
        assert out.shape == (*lead_shape, out_ch)
        err = float(jnp.max(jnp.abs(out - ref)))
        assert jnp.allclose(out, ref, atol=1e-4, rtol=1e-4), err

    # Case 1: the shape Pose_Module actually uses for its Embedding_module:
    #   Embedding_module(hidden_dims=256, num_heads=8) on the pairwise bias
    #   tensor [B, T, V, V, 256] with B=2, T=8, V=19 -> M=5776.
    #   Exercises the lane-dense single-K fast path with 2 M steps (one per
    #   v7x TensorCore) and an M tail handled by output masking.
    run_case((2, 8, 19, 19), 256, 8, ks[0], ks[1])

    # Case 2: tiny single-block path (M=16, K=32, out_ch=64).
    run_case((2, 8), 32, 64, ks[2], ks[3])

    # Case 3: deep-K path (in_ch=2048 -> TK=1024, 2 K steps) with the small
    #   weight held resident in VMEM and sliced in-kernel.
    run_case((4, 16), 2048, 8, ks[4], ks[5])

    # Case 4: generic-Linear path: out_ch tiled (TN=256 over out_ch=640) and
    #   the weight streamed as (TN, TK) blocks with a K accumulator.
    run_case((4, 8), 2048, 640, ks[6], ks[7])

    print("KERNEL_OK")
</pallas_src>

<mosaic_0001>
module attributes {stable_mosaic.version = 11 : i64} {
  func.func @_linear_scale_kernel_single_k(%arg0: i32, %arg1: i32, %arg2: memref<2944x256xf32, #tpu.memory_space<vmem>>, %arg3: memref<8x256xf32, #tpu.memory_space<vmem>>, %arg4: memref<8x2944xf32, #tpu.memory_space<vmem>>) attributes {dimension_semantics = [#tpu.dimension_semantics<parallel>, #tpu.dimension_semantics<parallel>], iteration_bounds = array<i64: 2, 1>, scalar_prefetch = 0 : i64, scratch_operands = 0 : i64, tpu.core_type = #tpu.core_type<tc>, window_params = [{transform_indices = @transform_0, window_bounds = array<i64: 2944, 256>}, {transform_indices = @transform_1, window_bounds = array<i64: 8, 256>}, {transform_indices = @transform_2, window_bounds = array<i64: 8, 2944>}]} {
    %c0 = arith.constant 0 : index
    %c0_0 = arith.constant 0 : index
    %0 = vector.load %arg3[%c0, %c0_0] : memref<8x256xf32, #tpu.memory_space<vmem>>, vector<8x256xf32>
    %c0_1 = arith.constant 0 : index
    %c0_2 = arith.constant 0 : index
    %1 = vector.load %arg2[%c0_1, %c0_2] : memref<2944x256xf32, #tpu.memory_space<vmem>>, vector<2944x256xf32>
    %cst = arith.constant dense<0.000000e+00> : vector<8x2944xf32>
    %2 = tpu.matmul %0, %1, %cst {dimension_numbers = #tpu.dot_dimension_numbers<[1], [1], [0], [0], [0, 0, 1, 0], [], []>} : vector<8x256xf32>, vector<2944x256xf32>, vector<8x2944xf32> -> vector<8x2944xf32>
    %cst_3 = arith.constant 0.353553385 : f32
    %3 = vector.broadcast %cst_3 : f32 to vector<8x2944xf32>
    %4 = arith.mulf %2, %3 : vector<8x2944xf32>
    %c0_4 = arith.constant 0 : index
    %c0_5 = arith.constant 0 : index
    %5 = vector.load %arg4[%c0_4, %c0_5] : memref<8x2944xf32, #tpu.memory_space<vmem>>, vector<8x2944xf32>
    tpu.vector_store %arg4[%c0_4, %c0_5], %4 {strides = array<i32>} : memref<8x2944xf32, #tpu.memory_space<vmem>>, vector<8x2944xf32>,
    return
  }
  func.func @transform_0(%arg0: i32, %arg1: i32) -> (i32, i32) {
    %c0_i32 = arith.constant 0 : i32
    %c0_i32_0 = arith.constant 0 : i32
    return %arg0, %c0_i32 : i32, i32
  }
  func.func @transform_1(%arg0: i32, %arg1: i32) -> (i32, i32) {
    %c0_i32 = arith.constant 0 : i32
    %c0_i32_0 = arith.constant 0 : i32
    return %arg1, %c0_i32 : i32, i32
  }
  func.func @transform_2(%arg0: i32, %arg1: i32) -> (i32, i32) {
    %c0_i32 = arith.constant 0 : i32
    return %arg1, %arg0 : i32, i32
  }
}

</mosaic_0001>

<llo_original>
// kernel: tpu_custom_call.1
$region0: #{tpu_custom_call.1}
  #allocation0 [shape = 'u32[]', space=smem, size = 0x4, offset = 0x4, fixed_abs, tag = 'smem constant byte address 0x4 - core index']
  #allocation1 [shape = 'u32[72,128]{1,0:T(1,128)}', space=vmem, size = 0x9000, scoped, tag = 'internal scratch']
  %s0 = inlined_call_operand.hbm [shape: f32[5776,256], index: 0, kind: input, shape index: {}]
  %s1 = inlined_call_operand.hbm [shape: f32[8,256], index: 1, kind: input, shape index: {}]
  %s2 = inlined_call_operand.hbm [shape: f32[8,5776], index: 2, kind: output, shape index: {}]
  %s3 = sld [smem:[#allocation0]]
  $region49: #{tpu_custom_call.1} parent=0
    _
  %s5 = ssub.s32 1, %s3
  %s6 = scalar_select 0, %s5, %s3
  $region1: #{tpu_custom_call.1} parent=0
    #allocation2 [shape = 'u8[6029312]{0}', space=vmem, size = 0x5c0000, scoped, tag = 'input window, operand 0']
    #allocation3 [shape = 's32[2]{0}', space=sflag, size = 0x8, scoped, tag = 'scoped memory for tpu_custom_call.1']
    #allocation4 [shape = 's32[2]{0}', space=sflag, size = 0x8, scoped, tag = 'scoped memory for tpu_custom_call.1']
    #allocation5 [shape = 'u8[8192]{0}', space=vmem, size = 0x2000, scoped, tag = 'input window, operand 1, single buffered']
    #allocation6 [shape = 's32[1]{0}', space=sflag, size = 0x4, scoped, tag = 'scoped memory for tpu_custom_call.1']
    #allocation7 [shape = 'u8[188416]{0}', space=vmem, size = 0x2e000, scoped, tag = 'output window, operand 0']
    %7 = vsyncpa [#allocation3], 0
    %s8 = scalar_lea.sflag [#allocation3], 1
    %9 = vsyncpa %s8, 0
    %10 = vsyncpa [#allocation6], 0
    %11 = vsyncpa [#allocation4], 0
    %s12 = scalar_lea.sflag [#allocation4], 1
    %13 = vsyncpa %s12, 0
    loop: start=0, step=1, limit=4
    $region2: #{tpu_custom_call.1} parent=1 // loop_pre_header
      _
    $region3: #{tpu_custom_call.1} parent=1 // loop_header
      %s15 = sphi 0, %s19
      %p16 = scmp.ge.s32.totalorder %s15, 4
      %s22 = sphi 0, %s34
      %s23 = sphi 0, %s30
      %s24 = sphi 0, %s22
      %s25 = sphi 0, %s23
      %s26 = sphi 0, %s24
      %s27 = sphi 0, %s25
      %s37 = sphi 0, %s39
      %s40 = sphi 0, %s37
      %s41 = sphi 0, %s40
      %s57 = sphi 0, %s41
      %s63 = sphi 0, %s65
      %s66 = sphi 0, %s63
      %s67 = sphi 0, %s66
      %s83 = sphi 0, %s67
      %s91 = sphi 0, %s93
      %s94 = sphi 0, %s91
      %s95 = sphi 0, %s94
      %s111 = sphi 0, %s95
    $region4: #{tpu_custom_call.1} parent=1 // loop_header_branch
      %18 = sbr.rel (%p16) target = $region8
    $region5: #{tpu_custom_call.1} parent=1 // loop_body
      %s20 = ssub.s32 %s15, 1
      %s21 = ssub.s32 %s15, 2
      %s28 = sadd.s32 1, %s23
      %p29 = scmp.ge.s32.totalorder %s28, 1
      %s30 = scalar_select %p29, 0, %s28
      %s31 = sadd.s32 1, %s22
      %s32 = scalar_select %p29, %s31, %s22
      %p33 = scmp.ge.s32.totalorder %s32, 2
      %s34 = scalar_select %p33, 0, %s32
      %s35 = ssub.s32 %s22, %s34
      %p36 = scmp.eq.s32.totalorder %s35, 0
      %s38 = sadd.s32 %s37, 1
      %s39 = scalar_select %p36, %s37, %s38
      %p42 = pneg %p36
      %p43 = scmp.eq.s32.totalorder %s15, 1
      %p44 = por %p42, %p43
      %p45 = scmp.ne.s32.totalorder %s37, %s40
      %p46 = scmp.eq.s32.totalorder %s15, 0
      %p47 = por %p45, %p46
      %p48 = scmp.ne.s32.totalorder %s37, %s40
      %p49 = scmp.eq.s32.totalorder %s20, 1
      %p50 = por %p48, %p49
      %p51 = scmp.ne.s32.totalorder %s40, %s41
      %p52 = scmp.eq.s32.totalorder %s20, 0
      %p53 = por %p51, %p52
      %p54 = scmp.ne.s32.totalorder %s40, %s41
      %p55 = scmp.eq.s32.totalorder %s21, 1
      %p56 = por %p54, %p55
      %p58 = scmp.ne.s32.totalorder %s41, %s57
      %p59 = scmp.eq.s32.totalorder %s21, 0
      %p60 = por %p58, %p59
      %s61 = ssub.s32 %s23, %s30
      %p62 = scmp.eq.s32.totalorder %s61, 0
      %s64 = sadd.s32 %s63, 1
      %s65 = scalar_select %p62, %s63, %s64
      %p68 = pneg %p62
      %p69 = scmp.eq.s32.totalorder %s15, 1
      %p70 = por %p68, %p69
      %p71 = scmp.ne.s32.totalorder %s63, %s66
      %p72 = scmp.eq.s32.totalorder %s15, 0
      %p73 = por %p71, %p72
      %p74 = scmp.ne.s32.totalorder %s63, %s66
      %p75 = scmp.eq.s32.totalorder %s20, 1
      %p76 = por %p74, %p75
      %p77 = scmp.ne.s32.totalorder %s66, %s67
      %p78 = scmp.eq.s32.totalorder %s20, 0
      %p79 = por %p77, %p78
      %p80 = scmp.ne.s32.totalorder %s66, %s67
      %p81 = scmp.eq.s32.totalorder %s21, 1
      %p82 = por %p80, %p81
      %p84 = scmp.ne.s32.totalorder %s67, %s83
      %p85 = scmp.eq.s32.totalorder %s21, 0
      %p86 = por %p84, %p85
      %s87 = ssub.s32 %s23, %s30
      %s88 = ssub.s32 %s22, %s34
      %s89 = sor.u32 %s87, %s88
      %p90 = scmp.eq.s32.totalorder %s89, 0
      %s92 = sadd.s32 %s91, 1
      %s93 = scalar_select %p90, %s91, %s92
      %p96 = pneg %p90
      %p97 = scmp.eq.s32.totalorder %s15, 1
      %p98 = por %p96, %p97
      %p99 = scmp.ne.s32.totalorder %s91, %s94
      %p100 = scmp.eq.s32.totalorder %s15, 0
      %p101 = por %p99, %p100
      %p102 = scmp.ne.s32.totalorder %s91, %s94
      %p103 = scmp.eq.s32.totalorder %s20, 1
      %p104 = por %p102, %p103
      %p105 = scmp.ne.s32.totalorder %s94, %s95
      %p106 = scmp.eq.s32.totalorder %s20, 0
      %p107 = por %p105, %p106
      %p108 = scmp.ne.s32.totalorder %s94, %s95
      %p109 = scmp.eq.s32.totalorder %s21, 1
      %p110 = por %p108, %p109
      %p112 = scmp.ne.s32.totalorder %s95, %s111
      %p113 = scmp.eq.s32.totalorder %s21, 0
      %p114 = por %p112, %p113
      %p115 = scmp.le.s32.totalorder 1, %s15
      %p116 = scmp.lt.s32.totalorder %s15, 3
      %p117 = pnand %p115, %p116
      %p118 = pneg %p117
      // Predicated region
      $region9: #{tpu_custom_call.1} parent=5 // pred_check
        _
      $region10: #{tpu_custom_call.1} parent=5 // pred_check_branch
        %120 = sbr.rel (%p117) target = $region12
      $region11: #{tpu_custom_call.1} parent=5 // pred_region
        %s121 = ssub.s32 %s15, 1
        // Predicated region
        $region13: #{tpu_custom_call.1} parent=11 // pred_check
          %p122 = pneg %p79
        $region14: #{tpu_custom_call.1} parent=11 // pred_check_branch
          %124 = sbr.rel (%p122) target = $region16
        $region15: #{tpu_custom_call.1} parent=11 // pred_region
          %126 = vsyncadd [#allocation6], 0
          %s127 = smul.addr %s25, 2
          %s128 = smul.addr %s127, 8
          %s129 = scalar_lea.hbm %s1, %s128
          %s131 = sshll.u32 %s129, 4
          %s132 = int_to_ptr.hbm [resolvable:$true] %s131
          %s133 = sshll.u32 [#allocation5], 4
          %s134 = int_to_ptr.vmem [resolvable:$true] %s133
          %136 = dma.hbm_to_vmem [thread:$0]  %s132, 256, %s134, [#allocation6]
        $region16: #{tpu_custom_call.1} parent=11 // pred_fallthru
          _
      $region12: #{tpu_custom_call.1} parent=5 // pred_fallthru
        _
      %p137 = scmp.lt.s32.totalorder %s15, 2
      // Predicated region
      $region17: #{tpu_custom_call.1} parent=5 // pred_check
        %p138 = pneg %p137
      $region18: #{tpu_custom_call.1} parent=5 // pred_check_branch
        %140 = sbr.rel (%p138) target = $region20
      $region19: #{tpu_custom_call.1} parent=5 // pred_region
        // Predicated region
        $region21: #{tpu_custom_call.1} parent=19 // pred_check
          %p141 = pneg %p47
        $region22: #{tpu_custom_call.1} parent=19 // pred_check_branch
          %143 = sbr.rel (%p141) target = $region24
        $region23: #{tpu_custom_call.1} parent=19 // pred_region
          %s144 = sand.u32 %s37, 1
          %s145 = scalar_lea.sflag [#allocation3], %s144
          %s146 = sand.u32 %s37, 1
          %s147 = smul.addr %s146, 5888
          %s148 = scalar_lea.vmem [#allocation2], %s147
          %s149 = smul.u32 368, %s22
          %s150 = ssub.s32 722, %s149
          %p151 = scmp.lt.s32.totalorder %s150, 368
          %s152 = scalar_select %p151, %s150, 368
          %s153 = smul.u32 8, %s152
          %s154 = smul.u32 %s153, 2
          %s155 = ssub.s32 5888, %s154
          %s156 = sshll.u32 %s155, 4
          %157 = vsyncadd %s145, %s156
          %p158 = scmp.ne.s32.totalorder 0, %s154
          %s159 = smul.addr %s149, 2
          %s160 = smul.addr %s159, 8
          %s161 = scalar_lea.hbm %s0, %s160
          %s162 = smul.u32 16, %s152
          %s163 = sshll.u32 %s161, 4
          %s164 = int_to_ptr.hbm [resolvable:$true] %s163
          %s165 = sshll.u32 %s148, 4
          %s166 = int_to_ptr.vmem [resolvable:$true] %s165
          %s167 = sshll.u32 %s162, 4
          %171 = dma.hbm_to_vmem [thread:$0]  (%p158), %s164, %s167, %s166, %s145, 256, 256, 16
        $region24: #{tpu_custom_call.1} parent=19 // pred_fallthru
          _
      $region20: #{tpu_custom_call.1} parent=5 // pred_fallthru
        _
      %p172 = scmp.le.s32.totalorder 1, %s15
      %p173 = scmp.lt.s32.totalorder %s15, 3
      %p174 = pnand %p172, %p173
      %p175 = pneg %p174
      // Predicated region
      $region25: #{tpu_custom_call.1} parent=5 // pred_check
        _
      $region26: #{tpu_custom_call.1} parent=5 // pred_check_branch
        %177 = sbr.rel (%p174) target = $region28
      $region27: #{tpu_custom_call.1} parent=5 // pred_region
        %s178 = ssub.s32 %s15, 1
        %s179 = sand.u32 %s40, 1
        %s180 = scalar_lea.sflag [#allocation3], %s179
        %s181 = sand.u32 %s40, 1
        %s182 = smul.addr %s181, 5888
        %s183 = scalar_lea.vmem [#allocation2], %s182
        // Predicated region
        $region29: #{tpu_custom_call.1} parent=27 // pred_check
          %p184 = pneg %p53
        $region30: #{tpu_custom_call.1} parent=27 // pred_check_branch
          %186 = sbr.rel (%p184) target = $region32
        $region31: #{tpu_custom_call.1} parent=27 // pred_region
          %188 = dma.done %s180, 94208
        $region32: #{tpu_custom_call.1} parent=27 // pred_fallthru
          _
        // Predicated region
        $region33: #{tpu_custom_call.1} parent=27 // pred_check
          %p189 = pneg %p79
        $region34: #{tpu_custom_call.1} parent=27 // pred_check_branch
          %191 = sbr.rel (%p189) target = $region36
        $region35: #{tpu_custom_call.1} parent=27 // pred_region
          %193 = dma.done [#allocation6], 256
        $region36: #{tpu_custom_call.1} parent=27 // pred_fallthru
          _
        %s194 = sand.u32 %s40, 1
        %s195 = scalar_lea.sflag [#allocation3], %s194
        %s196 = sand.u32 %s40, 1
        %s197 = smul.addr %s196, 5888
        %s198 = scalar_lea.vmem [#allocation2], %s197
        %p199 = pneg %p53
        %p200 = pneg %p50
        %p201 = pneg %p79
        %p202 = pneg %p76
        %p203 = pneg %p107
        %p204 = pneg %p104
        %s205 = sand.u32 %s94, 1
        %s206 = scalar_lea.sflag [#allocation4], %s205
        %s207 = sand.u32 %s94, 1
        %s208 = smul.addr %s207, 184
        %s209 = scalar_lea.vmem [#allocation7], %s208
        %s210 = smul.u32 368, %s24
        %s211 = ssub.s32 722, %s210
        %p212 = scmp.lt.s32.totalorder %s211, 368
        %s213 = scalar_select %p212, %s211, 368
        %s214 = smul.u32 8, %s213
        %s215 = smul.u32 %s214, 2
        %s216 = smul.u32 23, %s24
        %v217 = vld [vmem:[#allocation5] sm:$0xff]
        %v218 = vld [vmem:[#allocation5 + $0x8] sm:$0xff]
        %v219 = vld [vmem:[%s183] sm:$0xff]
        %v220 = vld [vmem:[%s183 + $0x8] sm:$0xff]
        %v221 = vld [vmem:[%s183 + $0x10] sm:$0xff]
        %v222 = vld [vmem:[%s183 + $0x18] sm:$0xff]
        %v223 = vld [vmem:[%s183 + $0x20] sm:$0xff]
        %v224 = vld [vmem:[%s183 + $0x28] sm:$0xff]
        %v225 = vld [vmem:[%s183 + $0x30] sm:$0xff]
        %v226 = vld [vmem:[%s183 + $0x38] sm:$0xff]
        %v227 = vld [vmem:[%s183 + $0x40] sm:$0xff]
        %v228 = vld [vmem:[%s183 + $0x48] sm:$0xff]
        %v229 = vld [vmem:[%s183 + $0x50] sm:$0xff]
        %v230 = vld [vmem:[%s183 + $0x58] sm:$0xff]
        %v231 = vld [vmem:[%s183 + $0x60] sm:$0xff]
        %v232 = vld [vmem:[%s183 + $0x68] sm:$0xff]
        %v233 = vld [vmem:[%s183 + $0x70] sm:$0xff]
        %v234 = vld [vmem:[%s183 + $0x78] sm:$0xff]
        %v235 = vld [vmem:[%s183 + $0x80] sm:$0xff]
        %v236 = vld [vmem:[%s183 + $0x88] sm:$0xff]
        %v237 = vld [vmem:[%s183 + $0x90] sm:$0xff]
        %v238 = vld [vmem:[%s183 + $0x98] sm:$0xff]
        %v239 = vld [vmem:[%s183 + $0xa0] sm:$0xff]
        %v240 = vld [vmem:[%s183 + $0xa8] sm:$0xff]
        %v241 = vld [vmem:[%s183 + $0xb0] sm:$0xff]
        %v242 = vld [vmem:[%s183 + $0xb8] sm:$0xff]
        %v243 = vld [vmem:[%s183 + $0xc0] sm:$0xff]
        %v244 = vld [vmem:[%s183 + $0xc8] sm:$0xff]
        %v245 = vld [vmem:[%s183 + $0xd0] sm:$0xff]
        %v246 = vld [vmem:[%s183 + $0xd8] sm:$0xff]
        %v247 = vld [vmem:[%s183 + $0xe0] sm:$0xff]
        %v248 = vld [vmem:[%s183 + $0xe8] sm:$0xff]
        %v249 = vld [vmem:[%s183 + $0xf0] sm:$0xff]
        %v250 = vld [vmem:[%s183 + $0xf8] sm:$0xff]
        %v251 = vld [vmem:[%s183 + $0x100] sm:$0xff]
        %v252 = vld [vmem:[%s183 + $0x108] sm:$0xff]
        %v253 = vld [vmem:[%s183 + $0x110] sm:$0xff]
        %v254 = vld [vmem:[%s183 + $0x118] sm:$0xff]
        %v255 = vld [vmem:[%s183 + $0x120] sm:$0xff]
        %v256 = vld [vmem:[%s183 + $0x128] sm:$0xff]
        %v257 = vld [vmem:[%s183 + $0x130] sm:$0xff]
        %v258 = vld [vmem:[%s183 + $0x138] sm:$0xff]
        %v259 = vld [vmem:[%s183 + $0x140] sm:$0xff]
        %v260 = vld [vmem:[%s183 + $0x148] sm:$0xff]
        %v261 = vld [vmem:[%s183 + $0x150] sm:$0xff]
        %v262 = vld [vmem:[%s183 + $0x158] sm:$0xff]
        %v263 = vld [vmem:[%s183 + $0x160] sm:$0xff]
        %v264 = vld [vmem:[%s183 + $0x168] sm:$0xff]
        %v265 = vld [vmem:[%s183 + $0x170] sm:$0xff]
        %v266 = vld [vmem:[%s183 + $0x178] sm:$0xff]
        %v267 = vld [vmem:[%s183 + $0x180] sm:$0xff]
        %v268 = vld [vmem:[%s183 + $0x188] sm:$0xff]
        %v269 = vld [vmem:[%s183 + $0x190] sm:$0xff]
        %v270 = vld [vmem:[%s183 + $0x198] sm:$0xff]
        %v271 = vld [vmem:[%s183 + $0x1a0] sm:$0xff]
        %v272 = vld [vmem:[%s183 + $0x1a8] sm:$0xff]
        %v273 = vld [vmem:[%s183 + $0x1b0] sm:$0xff]
        %v274 = vld [vmem:[%s183 + $0x1b8] sm:$0xff]
        %v275 = vld [vmem:[%s183 + $0x1c0] sm:$0xff]
        %v276 = vld [vmem:[%s183 + $0x1c8] sm:$0xff]
        %v277 = vld [vmem:[%s183 + $0x1d0] sm:$0xff]
        %v278 = vld [vmem:[%s183 + $0x1d8] sm:$0xff]
        %v279 = vld [vmem:[%s183 + $0x1e0] sm:$0xff]
        %v280 = vld [vmem:[%s183 + $0x1e8] sm:$0xff]
        %v281 = vld [vmem:[%s183 + $0x1f0] sm:$0xff]
        %v282 = vld [vmem:[%s183 + $0x1f8] sm:$0xff]
        %v283 = vld [vmem:[%s183 + $0x200] sm:$0xff]
        %v284 = vld [vmem:[%s183 + $0x208] sm:$0xff]
        %v285 = vld [vmem:[%s183 + $0x210] sm:$0xff]
        %v286 = vld [vmem:[%s183 + $0x218] sm:$0xff]
        %v287 = vld [vmem:[%s183 + $0x220] sm:$0xff]
        %v288 = vld [vmem:[%s183 + $0x228] sm:$0xff]
        %v289 = vld [vmem:[%s183 + $0x230] sm:$0xff]
        %v290 = vld [vmem:[%s183 + $0x238] sm:$0xff]
        %v291 = vld [vmem:[%s183 + $0x240] sm:$0xff]
        %v292 = vld [vmem:[%s183 + $0x248] sm:$0xff]
        %v293 = vld [vmem:[%s183 + $0x250] sm:$0xff]
        %v294 = vld [vmem:[%s183 + $0x258] sm:$0xff]
        %v295 = vld [vmem:[%s183 + $0x260] sm:$0xff]
        %v296 = vld [vmem:[%s183 + $0x268] sm:$0xff]
        %v297 = vld [vmem:[%s183 + $0x270] sm:$0xff]
        %v298 = vld [vmem:[%s183 + $0x278] sm:$0xff]
        %v299 = vld [vmem:[%s183 + $0x280] sm:$0xff]
        %v300 = vld [vmem:[%s183 + $0x288] sm:$0xff]
        %v301 = vld [vmem:[%s183 + $0x290] sm:$0xff]
        %v302 = vld [vmem:[%s183 + $0x298] sm:$0xff]
        %v303 = vld [vmem:[%s183 + $0x2a0] sm:$0xff]
        %v304 = vld [vmem:[%s183 + $0x2a8] sm:$0xff]
        %v305 = vld [vmem:[%s183 + $0x2b0] sm:$0xff]
        %v306 = vld [vmem:[%s183 + $0x2b8] sm:$0xff]
        %v307 = vld [vmem:[%s183 + $0x2c0] sm:$0xff]
        %v308 = vld [vmem:[%s183 + $0x2c8] sm:$0xff]
        %v309 = vld [vmem:[%s183 + $0x2d0] sm:$0xff]
        %v310 = vld [vmem:[%s183 + $0x2d8] sm:$0xff]
        %v311 = vld [vmem:[%s183 + $0x2e0] sm:$0xff]
        %v312 = vld [vmem:[%s183 + $0x2e8] sm:$0xff]
        %v313 = vld [vmem:[%s183 + $0x2f0] sm:$0xff]
        %v314 = vld [vmem:[%s183 + $0x2f8] sm:$0xff]
        %v315 = vld [vmem:[%s183 + $0x300] sm:$0xff]
        %v316 = vld [vmem:[%s183 + $0x308] sm:$0xff]
        %v317 = vld [vmem:[%s183 + $0x310] sm:$0xff]
        %v318 = vld [vmem:[%s183 + $0x318] sm:$0xff]
        %v319 = vld [vmem:[%s183 + $0x320] sm:$0xff]
        %v320 = vld [vmem:[%s183 + $0x328] sm:$0xff]
        %v321 = vld [vmem:[%s183 + $0x330] sm:$0xff]
        %v322 = vld [vmem:[%s183 + $0x338] sm:$0xff]
        %v323 = vld [vmem:[%s183 + $0x340] sm:$0xff]
        %v324 = vld [vmem:[%s183 + $0x348] sm:$0xff]
        %v325 = vld [vmem:[%s183 + $0x350] sm:$0xff]
        %v326 = vld [vmem:[%s183 + $0x358] sm:$0xff]
        %v327 = vld [vmem:[%s183 + $0x360] sm:$0xff]
        %v328 = vld [vmem:[%s183 + $0x368] sm:$0xff]
        %v329 = vld [vmem:[%s183 + $0x370] sm:$0xff]
        %v330 = vld [vmem:[%s183 + $0x378] sm:$0xff]
        %v331 = vld [vmem:[%s183 + $0x380] sm:$0xff]
        %v332 = vld [vmem:[%s183 + $0x388] sm:$0xff]
        %v333 = vld [vmem:[%s183 + $0x390] sm:$0xff]
        %v334 = vld [vmem:[%s183 + $0x398] sm:$0xff]
        %v335 = vld [vmem:[%s183 + $0x3a0] sm:$0xff]
        %v336 = vld [vmem:[%s183 + $0x3a8] sm:$0xff]
        %v337 = vld [vmem:[%s183 + $0x3b0] sm:$0xff]
        %v338 = vld [vmem:[%s183 + $0x3b8] sm:$0xff]
        %v339 = vld [vmem:[%s183 + $0x3c0] sm:$0xff]
        %v340 = vld [vmem:[%s183 + $0x3c8] sm:$0xff]
        %v341 = vld [vmem:[%s183 + $0x3d0] sm:$0xff]
        %v342 = vld [vmem:[%s183 + $0x3d8] sm:$0xff]
        %v343 = vld [vmem:[%s183 + $0x3e0] sm:$0xff]
        %v344 = vld [vmem:[%s183 + $0x3e8] sm:$0xff]
        %v345 = vld [vmem:[%s183 + $0x3f0] sm:$0xff]
        %v346 = vld [vmem:[%s183 + $0x3f8] sm:$0xff]
        %v347 = vld [vmem:[%s183 + $0x400] sm:$0xff]
        %v348 = vld [vmem:[%s183 + $0x408] sm:$0xff]
        %v349 = vld [vmem:[%s183 + $0x410] sm:$0xff]
        %v350 = vld [vmem:[%s183 + $0x418] sm:$0xff]
        %v351 = vld [vmem:[%s183 + $0x420] sm:$0xff]
        %v352 = vld [vmem:[%s183 + $0x428] sm:$0xff]
        %v353 = vld [vmem:[%s183 + $0x430] sm:$0xff]
        %v354 = vld [vmem:[%s183 + $0x438] sm:$0xff]
        %v355 = vld [vmem:[%s183 + $0x440] sm:$0xff]
        %v356 = vld [vmem:[%s183 + $0x448] sm:$0xff]
        %v357 = vld [vmem:[%s183 + $0x450] sm:$0xff]
        %v358 = vld [vmem:[%s183 + $0x458] sm:$0xff]
        %v359 = vld [vmem:[%s183 + $0x460] sm:$0xff]
        %v360 = vld [vmem:[%s183 + $0x468] sm:$0xff]
        %v361 = vld [vmem:[%s183 + $0x470] sm:$0xff]
        %v362 = vld [vmem:[%s183 + $0x478] sm:$0xff]
        %v363 = vld [vmem:[%s183 + $0x480] sm:$0xff]
        %v364 = vld [vmem:[%s183 + $0x488] sm:$0xff]
        %v365 = vld [vmem:[%s183 + $0x490] sm:$0xff]
        %v366 = vld [vmem:[%s183 + $0x498] sm:$0xff]
        %v367 = vld [vmem:[%s183 + $0x4a0] sm:$0xff]
        %v368 = vld [vmem:[%s183 + $0x4a8] sm:$0xff]
        %v369 = vld [vmem:[%s183 + $0x4b0] sm:$0xff]
        %v370 = vld [vmem:[%s183 + $0x4b8] sm:$0xff]
        %v371 = vld [vmem:[%s183 + $0x4c0] sm:$0xff]
        %v372 = vld [vmem:[%s183 + $0x4c8] sm:$0xff]
        %v373 = vld [vmem:[%s183 + $0x4d0] sm:$0xff]
        %v374 = vld [vmem:[%s183 + $0x4d8] sm:$0xff]
        %v375 = vld [vmem:[%s183 + $0x4e0] sm:$0xff]
        %v376 = vld [vmem:[%s183 + $0x4e8] sm:$0xff]
        %v377 = vld [vmem:[%s183 + $0x4f0] sm:$0xff]
        %v378 = vld [vmem:[%s183 + $0x4f8] sm:$0xff]
        %v379 = vld [vmem:[%s183 + $0x500] sm:$0xff]
        %v380 = vld [vmem:[%s183 + $0x508] sm:$0xff]
        %v381 = vld [vmem:[%s183 + $0x510] sm:$0xff]
        %v382 = vld [vmem:[%s183 + $0x518] sm:$0xff]
        %v383 = vld [vmem:[%s183 + $0x520] sm:$0xff]
        %v384 = vld [vmem:[%s183 + $0x528] sm:$0xff]
        %v385 = vld [vmem:[%s183 + $0x530] sm:$0xff]
        %v386 = vld [vmem:[%s183 + $0x538] sm:$0xff]
        %v387 = vld [vmem:[%s183 + $0x540] sm:$0xff]
        %v388 = vld [vmem:[%s183 + $0x548] sm:$0xff]
        %v389 = vld [vmem:[%s183 + $0x550] sm:$0xff]
        %v390 = vld [vmem:[%s183 + $0x558] sm:$0xff]
        %v391 = vld [vmem:[%s183 + $0x560] sm:$0xff]
        %v392 = vld [vmem:[%s183 + $0x568] sm:$0xff]
        %v393 = vld [vmem:[%s183 + $0x570] sm:$0xff]
        %v394 = vld [vmem:[%s183 + $0x578] sm:$0xff]
        %v395 = vld [vmem:[%s183 + $0x580] sm:$0xff]
        %v396 = vld [vmem:[%s183 + $0x588] sm:$0xff]
        %v397 = vld [vmem:[%s183 + $0x590] sm:$0xff]
        %v398 = vld [vmem:[%s183 + $0x598] sm:$0xff]
        %v399 = vld [vmem:[%s183 + $0x5a0] sm:$0xff]
        %v400 = vld [vmem:[%s183 + $0x5a8] sm:$0xff]
        %v401 = vld [vmem:[%s183 + $0x5b0] sm:$0xff]
        %v402 = vld [vmem:[%s183 + $0x5b8] sm:$0xff]
        %v403 = vld [vmem:[%s183 + $0x5c0] sm:$0xff]
        %v404 = vld [vmem:[%s183 + $0x5c8] sm:$0xff]
        %v405 = vld [vmem:[%s183 + $0x5d0] sm:$0xff]
        %v406 = vld [vmem:[%s183 + $0x5d8] sm:$0xff]
        %v407 = vld [vmem:[%s183 + $0x5e0] sm:$0xff]
        %v408 = vld [vmem:[%s183 + $0x5e8] sm:$0xff]
        %v409 = vld [vmem:[%s183 + $0x5f0] sm:$0xff]
        %v410 = vld [vmem:[%s183 + $0x5f8] sm:$0xff]
        %v411 = vld [vmem:[%s183 + $0x600] sm:$0xff]
        %v412 = vld [vmem:[%s183 + $0x608] sm:$0xff]
        %v413 = vld [vmem:[%s183 + $0x610] sm:$0xff]
        %v414 = vld [vmem:[%s183 + $0x618] sm:$0xff]
        %v415 = vld [vmem:[%s183 + $0x620] sm:$0xff]
        %v416 = vld [vmem:[%s183 + $0x628] sm:$0xff]
        %v417 = vld [vmem:[%s183 + $0x630] sm:$0xff]
        %v418 = vld [vmem:[%s183 + $0x638] sm:$0xff]
        %v419 = vld [vmem:[%s183 + $0x640] sm:$0xff]
        %v420 = vld [vmem:[%s183 + $0x648] sm:$0xff]
        %v421 = vld [vmem:[%s183 + $0x650] sm:$0xff]
        %v422 = vld [vmem:[%s183 + $0x658] sm:$0xff]
        %v423 = vld [vmem:[%s183 + $0x660] sm:$0xff]
        %v424 = vld [vmem:[%s183 + $0x668] sm:$0xff]
        %v425 = vld [vmem:[%s183 + $0x670] sm:$0xff]
        %v426 = vld [vmem:[%s183 + $0x678] sm:$0xff]
        %v427 = vld [vmem:[%s183 + $0x680] sm:$0xff]
        %v428 = vld [vmem:[%s183 + $0x688] sm:$0xff]
        %v429 = vld [vmem:[%s183 + $0x690] sm:$0xff]
        %v430 = vld [vmem:[%s183 + $0x698] sm:$0xff]
        %v431 = vld [vmem:[%s183 + $0x6a0] sm:$0xff]
        %v432 = vld [vmem:[%s183 + $0x6a8] sm:$0xff]
        %v433 = vld [vmem:[%s183 + $0x6b0] sm:$0xff]
        %v434 = vld [vmem:[%s183 + $0x6b8] sm:$0xff]
        %v435 = vld [vmem:[%s183 + $0x6c0] sm:$0xff]
        %v436 = vld [vmem:[%s183 + $0x6c8] sm:$0xff]
        %v437 = vld [vmem:[%s183 + $0x6d0] sm:$0xff]
        %v438 = vld [vmem:[%s183 + $0x6d8] sm:$0xff]
        %v439 = vld [vmem:[%s183 + $0x6e0] sm:$0xff]
        %v440 = vld [vmem:[%s183 + $0x6e8] sm:$0xff]
        %v441 = vld [vmem:[%s183 + $0x6f0] sm:$0xff]
        %v442 = vld [vmem:[%s183 + $0x6f8] sm:$0xff]
        %v443 = vld [vmem:[%s183 + $0x700] sm:$0xff]
        %v444 = vld [vmem:[%s183 + $0x708] sm:$0xff]
        %v445 = vld [vmem:[%s183 + $0x710] sm:$0xff]
        %v446 = vld [vmem:[%s183 + $0x718] sm:$0xff]
        %v447 = vld [vmem:[%s183 + $0x720] sm:$0xff]
        %v448 = vld [vmem:[%s183 + $0x728] sm:$0xff]
        %v449 = vld [vmem:[%s183 + $0x730] sm:$0xff]
        %v450 = vld [vmem:[%s183 + $0x738] sm:$0xff]
        %v451 = vld [vmem:[%s183 + $0x740] sm:$0xff]
        %v452 = vld [vmem:[%s183 + $0x748] sm:$0xff]
        %v453 = vld [vmem:[%s183 + $0x750] sm:$0xff]
        %v454 = vld [vmem:[%s183 + $0x758] sm:$0xff]
        %v455 = vld [vmem:[%s183 + $0x760] sm:$0xff]
        %v456 = vld [vmem:[%s183 + $0x768] sm:$0xff]
        %v457 = vld [vmem:[%s183 + $0x770] sm:$0xff]
        %v458 = vld [vmem:[%s183 + $0x778] sm:$0xff]
        %v459 = vld [vmem:[%s183 + $0x780] sm:$0xff]
        %v460 = vld [vmem:[%s183 + $0x788] sm:$0xff]
        %v461 = vld [vmem:[%s183 + $0x790] sm:$0xff]
        %v462 = vld [vmem:[%s183 + $0x798] sm:$0xff]
        %v463 = vld [vmem:[%s183 + $0x7a0] sm:$0xff]
        %v464 = vld [vmem:[%s183 + $0x7a8] sm:$0xff]
        %v465 = vld [vmem:[%s183 + $0x7b0] sm:$0xff]
        %v466 = vld [vmem:[%s183 + $0x7b8] sm:$0xff]
        %v467 = vld [vmem:[%s183 + $0x7c0] sm:$0xff]
        %v468 = vld [vmem:[%s183 + $0x7c8] sm:$0xff]
        %v469 = vld [vmem:[%s183 + $0x7d0] sm:$0xff]
        %v470 = vld [vmem:[%s183 + $0x7d8] sm:$0xff]
        %v471 = vld [vmem:[%s183 + $0x7e0] sm:$0xff]
        %v472 = vld [vmem:[%s183 + $0x7e8] sm:$0xff]
        %v473 = vld [vmem:[%s183 + $0x7f0] sm:$0xff]
        %v474 = vld [vmem:[%s183 + $0x7f8] sm:$0xff]
        %v475 = vld [vmem:[%s183 + $0x800] sm:$0xff]
        %v476 = vld [vmem:[%s183 + $0x808] sm:$0xff]
        %v477 = vld [vmem:[%s183 + $0x810] sm:$0xff]
        %v478 = vld [vmem:[%s183 + $0x818] sm:$0xff]
        %v479 = vld [vmem:[%s183 + $0x820] sm:$0xff]
        %v480 = vld [vmem:[%s183 + $0x828] sm:$0xff]
        %v481 = vld [vmem:[%s183 + $0x830] sm:$0xff]
        %v482 = vld [vmem:[%s183 + $0x838] sm:$0xff]
        %v483 = vld [vmem:[%s183 + $0x840] sm:$0xff]
        %v484 = vld [vmem:[%s183 + $0x848] sm:$0xff]
        %v485 = vld [vmem:[%s183 + $0x850] sm:$0xff]
        %v486 = vld [vmem:[%s183 + $0x858] sm:$0xff]
        %v487 = vld [vmem:[%s183 + $0x860] sm:$0xff]
        %v488 = vld [vmem:[%s183 + $0x868] sm:$0xff]
        %v489 = vld [vmem:[%s183 + $0x870] sm:$0xff]
        %v490 = vld [vmem:[%s183 + $0x878] sm:$0xff]
        %v491 = vld [vmem:[%s183 + $0x880] sm:$0xff]
        %v492 = vld [vmem:[%s183 + $0x888] sm:$0xff]
        %v493 = vld [vmem:[%s183 + $0x890] sm:$0xff]
        %v494 = vld [vmem:[%s183 + $0x898] sm:$0xff]
        %v495 = vld [vmem:[%s183 + $0x8a0] sm:$0xff]
        %v496 = vld [vmem:[%s183 + $0x8a8] sm:$0xff]
        %v497 = vld [vmem:[%s183 + $0x8b0] sm:$0xff]
        %v498 = vld [vmem:[%s183 + $0x8b8] sm:$0xff]
        %v499 = vld [vmem:[%s183 + $0x8c0] sm:$0xff]
        %v500 = vld [vmem:[%s183 + $0x8c8] sm:$0xff]
        %v501 = vld [vmem:[%s183 + $0x8d0] sm:$0xff]
        %v502 = vld [vmem:[%s183 + $0x8d8] sm:$0xff]
        %v503 = vld [vmem:[%s183 + $0x8e0] sm:$0xff]
        %v504 = vld [vmem:[%s183 + $0x8e8] sm:$0xff]
        %v505 = vld [vmem:[%s183 + $0x8f0] sm:$0xff]
        %v506 = vld [vmem:[%s183 + $0x8f8] sm:$0xff]
        %v507 = vld [vmem:[%s183 + $0x900] sm:$0xff]
        %v508 = vld [vmem:[%s183 + $0x908] sm:$0xff]
        %v509 = vld [vmem:[%s183 + $0x910] sm:$0xff]
        %v510 = vld [vmem:[%s183 + $0x918] sm:$0xff]
        %v511 = vld [vmem:[%s183 + $0x920] sm:$0xff]
        %v512 = vld [vmem:[%s183 + $0x928] sm:$0xff]
        %v513 = vld [vmem:[%s183 + $0x930] sm:$0xff]
        %v514 = vld [vmem:[%s183 + $0x938] sm:$0xff]
        %v515 = vld [vmem:[%s183 + $0x940] sm:$0xff]
        %v516 = vld [vmem:[%s183 + $0x948] sm:$0xff]
        %v517 = vld [vmem:[%s183 + $0x950] sm:$0xff]
        %v518 = vld [vmem:[%s183 + $0x958] sm:$0xff]
        %v519 = vld [vmem:[%s183 + $0x960] sm:$0xff]
        %v520 = vld [vmem:[%s183 + $0x968] sm:$0xff]
        %v521 = vld [vmem:[%s183 + $0x970] sm:$0xff]
        %v522 = vld [vmem:[%s183 + $0x978] sm:$0xff]
        %v523 = vld [vmem:[%s183 + $0x980] sm:$0xff]
        %v524 = vld [vmem:[%s183 + $0x988] sm:$0xff]
        %v525 = vld [vmem:[%s183 + $0x990] sm:$0xff]
        %v526 = vld [vmem:[%s183 + $0x998] sm:$0xff]
        %v527 = vld [vmem:[%s183 + $0x9a0] sm:$0xff]
        %v528 = vld [vmem:[%s183 + $0x9a8] sm:$0xff]
        %v529 = vld [vmem:[%s183 + $0x9b0] sm:$0xff]
        %v530 = vld [vmem:[%s183 + $0x9b8] sm:$0xff]
        %v531 = vld [vmem:[%s183 + $0x9c0] sm:$0xff]
        %v532 = vld [vmem:[%s183 + $0x9c8] sm:$0xff]
        %v533 = vld [vmem:[%s183 + $0x9d0] sm:$0xff]
        %v534 = vld [vmem:[%s183 + $0x9d8] sm:$0xff]
        %v535 = vld [vmem:[%s183 + $0x9e0] sm:$0xff]
        %v536 = vld [vmem:[%s183 + $0x9e8] sm:$0xff]
        %v537 = vld [vmem:[%s183 + $0x9f0] sm:$0xff]
        %v538 = vld [vmem:[%s183 + $0x9f8] sm:$0xff]
        %v539 = vld [vmem:[%s183 + $0xa00] sm:$0xff]
        %v540 = vld [vmem:[%s183 + $0xa08] sm:$0xff]
        %v541 = vld [vmem:[%s183 + $0xa10] sm:$0xff]
        %v542 = vld [vmem:[%s183 + $0xa18] sm:$0xff]
        %v543 = vld [vmem:[%s183 + $0xa20] sm:$0xff]
        %v544 = vld [vmem:[%s183 + $0xa28] sm:$0xff]
        %v545 = vld [vmem:[%s183 + $0xa30] sm:$0xff]
        %v546 = vld [vmem:[%s183 + $0xa38] sm:$0xff]
        %v547 = vld [vmem:[%s183 + $0xa40] sm:$0xff]
        %v548 = vld [vmem:[%s183 + $0xa48] sm:$0xff]
        %v549 = vld [vmem:[%s183 + $0xa50] sm:$0xff]
        %v550 = vld [vmem:[%s183 + $0xa58] sm:$0xff]
        %v551 = vld [vmem:[%s183 + $0xa60] sm:$0xff]
        %v552 = vld [vmem:[%s183 + $0xa68] sm:$0xff]
        %v553 = vld [vmem:[%s183 + $0xa70] sm:$0xff]
        %v554 = vld [vmem:[%s183 + $0xa78] sm:$0xff]
        %v555 = vld [vmem:[%s183 + $0xa80] sm:$0xff]
        %v556 = vld [vmem:[%s183 + $0xa88] sm:$0xff]
        %v557 = vld [vmem:[%s183 + $0xa90] sm:$0xff]
        %v558 = vld [vmem:[%s183 + $0xa98] sm:$0xff]
        %v559 = vld [vmem:[%s183 + $0xaa0] sm:$0xff]
        %v560 = vld [vmem:[%s183 + $0xaa8] sm:$0xff]
        %v561 = vld [vmem:[%s183 + $0xab0] sm:$0xff]
        %v562 = vld [vmem:[%s183 + $0xab8] sm:$0xff]
        %v563 = vld [vmem:[%s183 + $0xac0] sm:$0xff]
        %v564 = vld [vmem:[%s183 + $0xac8] sm:$0xff]
        %v565 = vld [vmem:[%s183 + $0xad0] sm:$0xff]
        %v566 = vld [vmem:[%s183 + $0xad8] sm:$0xff]
        %v567 = vld [vmem:[%s183 + $0xae0] sm:$0xff]
        %v568 = vld [vmem:[%s183 + $0xae8] sm:$0xff]
        %v569 = vld [vmem:[%s183 + $0xaf0] sm:$0xff]
        %v570 = vld [vmem:[%s183 + $0xaf8] sm:$0xff]
        %v571 = vld [vmem:[%s183 + $0xb00] sm:$0xff]
        %v572 = vld [vmem:[%s183 + $0xb08] sm:$0xff]
        %v573 = vld [vmem:[%s183 + $0xb10] sm:$0xff]
        %v574 = vld [vmem:[%s183 + $0xb18] sm:$0xff]
        %v575 = vld [vmem:[%s183 + $0xb20] sm:$0xff]
        %v576 = vld [vmem:[%s183 + $0xb28] sm:$0xff]
        %v577 = vld [vmem:[%s183 + $0xb30] sm:$0xff]
        %v578 = vld [vmem:[%s183 + $0xb38] sm:$0xff]
        %v579 = vld [vmem:[%s183 + $0xb40] sm:$0xff]
        %v580 = vld [vmem:[%s183 + $0xb48] sm:$0xff]
        %v581 = vld [vmem:[%s183 + $0xb50] sm:$0xff]
        %v582 = vld [vmem:[%s183 + $0xb58] sm:$0xff]
        %v583 = vld [vmem:[%s183 + $0xb60] sm:$0xff]
        %v584 = vld [vmem:[%s183 + $0xb68] sm:$0xff]
        %v585 = vld [vmem:[%s183 + $0xb70] sm:$0xff]
        %v586 = vld [vmem:[%s183 + $0xb78] sm:$0xff]
        %v587 = vld [vmem:[%s183 + $0xb80] sm:$0xff]
        %v588 = vld [vmem:[%s183 + $0xb88] sm:$0xff]
        %v589 = vld [vmem:[%s183 + $0xb90] sm:$0xff]
        %v590 = vld [vmem:[%s183 + $0xb98] sm:$0xff]
        %v591 = vld [vmem:[%s183 + $0xba0] sm:$0xff]
        %v592 = vld [vmem:[%s183 + $0xba8] sm:$0xff]
        %v593 = vld [vmem:[%s183 + $0xbb0] sm:$0xff]
        %v594 = vld [vmem:[%s183 + $0xbb8] sm:$0xff]
        %v595 = vld [vmem:[%s183 + $0xbc0] sm:$0xff]
        %v596 = vld [vmem:[%s183 + $0xbc8] sm:$0xff]
        %v597 = vld [vmem:[%s183 + $0xbd0] sm:$0xff]
        %v598 = vld [vmem:[%s183 + $0xbd8] sm:$0xff]
        %v599 = vld [vmem:[%s183 + $0xbe0] sm:$0xff]
        %v600 = vld [vmem:[%s183 + $0xbe8] sm:$0xff]
        %v601 = vld [vmem:[%s183 + $0xbf0] sm:$0xff]
        %v602 = vld [vmem:[%s183 + $0xbf8] sm:$0xff]
        %v603 = vld [vmem:[%s183 + $0xc00] sm:$0xff]
        %v604 = vld [vmem:[%s183 + $0xc08] sm:$0xff]
        %v605 = vld [vmem:[%s183 + $0xc10] sm:$0xff]
        %v606 = vld [vmem:[%s183 + $0xc18] sm:$0xff]
        %v607 = vld [vmem:[%s183 + $0xc20] sm:$0xff]
        %v608 = vld [vmem:[%s183 + $0xc28] sm:$0xff]
        %v609 = vld [vmem:[%s183 + $0xc30] sm:$0xff]
        %v610 = vld [vmem:[%s183 + $0xc38] sm:$0xff]
        %v611 = vld [vmem:[%s183 + $0xc40] sm:$0xff]
        %v612 = vld [vmem:[%s183 + $0xc48] sm:$0xff]
        %v613 = vld [vmem:[%s183 + $0xc50] sm:$0xff]
        %v614 = vld [vmem:[%s183 + $0xc58] sm:$0xff]
        %v615 = vld [vmem:[%s183 + $0xc60] sm:$0xff]
        %v616 = vld [vmem:[%s183 + $0xc68] sm:$0xff]
        %v617 = vld [vmem:[%s183 + $0xc70] sm:$0xff]
        %v618 = vld [vmem:[%s183 + $0xc78] sm:$0xff]
        %v619 = vld [vmem:[%s183 + $0xc80] sm:$0xff]
        %v620 = vld [vmem:[%s183 + $0xc88] sm:$0xff]
        %v621 = vld [vmem:[%s183 + $0xc90] sm:$0xff]
        %v622 = vld [vmem:[%s183 + $0xc98] sm:$0xff]
        %v623 = vld [vmem:[%s183 + $0xca0] sm:$0xff]
        %v624 = vld [vmem:[%s183 + $0xca8] sm:$0xff]
        %v625 = vld [vmem:[%s183 + $0xcb0] sm:$0xff]
        %v626 = vld [vmem:[%s183 + $0xcb8] sm:$0xff]
        %v627 = vld [vmem:[%s183 + $0xcc0] sm:$0xff]
        %v628 = vld [vmem:[%s183 + $0xcc8] sm:$0xff]
        %v629 = vld [vmem:[%s183 + $0xcd0] sm:$0xff]
        %v630 = vld [vmem:[%s183 + $0xcd8] sm:$0xff]
        %v631 = vld [vmem:[%s183 + $0xce0] sm:$0xff]
        %v632 = vld [vmem:[%s183 + $0xce8] sm:$0xff]
        %v633 = vld [vmem:[%s183 + $0xcf0] sm:$0xff]
        %v634 = vld [vmem:[%s183 + $0xcf8] sm:$0xff]
        %v635 = vld [vmem:[%s183 + $0xd00] sm:$0xff]
        %v636 = vld [vmem:[%s183 + $0xd08] sm:$0xff]
        %v637 = vld [vmem:[%s183 + $0xd10] sm:$0xff]
        %v638 = vld [vmem:[%s183 + $0xd18] sm:$0xff]
        %v639 = vld [vmem:[%s183 + $0xd20] sm:$0xff]
        %v640 = vld [vmem:[%s183 + $0xd28] sm:$0xff]
        %v641 = vld [vmem:[%s183 + $0xd30] sm:$0xff]
        %v642 = vld [vmem:[%s183 + $0xd38] sm:$0xff]
        %v643 = vld [vmem:[%s183 + $0xd40] sm:$0xff]
        %v644 = vld [vmem:[%s183 + $0xd48] sm:$0xff]
        %v645 = vld [vmem:[%s183 + $0xd50] sm:$0xff]
        %v646 = vld [vmem:[%s183 + $0xd58] sm:$0xff]
        %v647 = vld [vmem:[%s183 + $0xd60] sm:$0xff]
        %v648 = vld [vmem:[%s183 + $0xd68] sm:$0xff]
        %v649 = vld [vmem:[%s183 + $0xd70] sm:$0xff]
        %v650 = vld [vmem:[%s183 + $0xd78] sm:$0xff]
        %v651 = vld [vmem:[%s183 + $0xd80] sm:$0xff]
        %v652 = vld [vmem:[%s183 + $0xd88] sm:$0xff]
        %v653 = vld [vmem:[%s183 + $0xd90] sm:$0xff]
        %v654 = vld [vmem:[%s183 + $0xd98] sm:$0xff]
        %v655 = vld [vmem:[%s183 + $0xda0] sm:$0xff]
        %v656 = vld [vmem:[%s183 + $0xda8] sm:$0xff]
        %v657 = vld [vmem:[%s183 + $0xdb0] sm:$0xff]
        %v658 = vld [vmem:[%s183 + $0xdb8] sm:$0xff]
        %v659 = vld [vmem:[%s183 + $0xdc0] sm:$0xff]
        %v660 = vld [vmem:[%s183 + $0xdc8] sm:$0xff]
        %v661 = vld [vmem:[%s183 + $0xdd0] sm:$0xff]
        %v662 = vld [vmem:[%s183 + $0xdd8] sm:$0xff]
        %v663 = vld [vmem:[%s183 + $0xde0] sm:$0xff]
        %v664 = vld [vmem:[%s183 + $0xde8] sm:$0xff]
        %v665 = vld [vmem:[%s183 + $0xdf0] sm:$0xff]
        %v666 = vld [vmem:[%s183 + $0xdf8] sm:$0xff]
        %v667 = vld [vmem:[%s183 + $0xe00] sm:$0xff]
        %v668 = vld [vmem:[%s183 + $0xe08] sm:$0xff]
        %v669 = vld [vmem:[%s183 + $0xe10] sm:$0xff]
        %v670 = vld [vmem:[%s183 + $0xe18] sm:$0xff]
        %v671 = vld [vmem:[%s183 + $0xe20] sm:$0xff]
        %v672 = vld [vmem:[%s183 + $0xe28] sm:$0xff]
        %v673 = vld [vmem:[%s183 + $0xe30] sm:$0xff]
        %v674 = vld [vmem:[%s183 + $0xe38] sm:$0xff]
        %v675 = vld [vmem:[%s183 + $0xe40] sm:$0xff]
        %v676 = vld [vmem:[%s183 + $0xe48] sm:$0xff]
        %v677 = vld [vmem:[%s183 + $0xe50] sm:$0xff]
        %v678 = vld [vmem:[%s183 + $0xe58] sm:$0xff]
        %v679 = vld [vmem:[%s183 + $0xe60] sm:$0xff]
        %v680 = vld [vmem:[%s183 + $0xe68] sm:$0xff]
        %v681 = vld [vmem:[%s183 + $0xe70] sm:$0xff]
        %v682 = vld [vmem:[%s183 + $0xe78] sm:$0xff]
        %v683 = vld [vmem:[%s183 + $0xe80] sm:$0xff]
        %v684 = vld [vmem:[%s183 + $0xe88] sm:$0xff]
        %v685 = vld [vmem:[%s183 + $0xe90] sm:$0xff]
        %v686 = vld [vmem:[%s183 + $0xe98] sm:$0xff]
        %v687 = vld [vmem:[%s183 + $0xea0] sm:$0xff]
        %v688 = vld [vmem:[%s183 + $0xea8] sm:$0xff]
        %v689 = vld [vmem:[%s183 + $0xeb0] sm:$0xff]
        %v690 = vld [vmem:[%s183 + $0xeb8] sm:$0xff]
        %v691 = vld [vmem:[%s183 + $0xec0] sm:$0xff]
        %v692 = vld [vmem:[%s183 + $0xec8] sm:$0xff]
        %v693 = vld [vmem:[%s183 + $0xed0] sm:$0xff]
        %v694 = vld [vmem:[%s183 + $0xed8] sm:$0xff]
        %v695 = vld [vmem:[%s183 + $0xee0] sm:$0xff]
        %v696 = vld [vmem:[%s183 + $0xee8] sm:$0xff]
        %v697 = vld [vmem:[%s183 + $0xef0] sm:$0xff]
        %v698 = vld [vmem:[%s183 + $0xef8] sm:$0xff]
        %v699 = vld [vmem:[%s183 + $0xf00] sm:$0xff]
        %v700 = vld [vmem:[%s183 + $0xf08] sm:$0xff]
        %v701 = vld [vmem:[%s183 + $0xf10] sm:$0xff]
        %v702 = vld [vmem:[%s183 + $0xf18] sm:$0xff]
        %v703 = vld [vmem:[%s183 + $0xf20] sm:$0xff]
        %v704 = vld [vmem:[%s183 + $0xf28] sm:$0xff]
        %v705 = vld [vmem:[%s183 + $0xf30] sm:$0xff]
        %v706 = vld [vmem:[%s183 + $0xf38] sm:$0xff]
        %v707 = vld [vmem:[%s183 + $0xf40] sm:$0xff]
        %v708 = vld [vmem:[%s183 + $0xf48] sm:$0xff]
        %v709 = vld [vmem:[%s183 + $0xf50] sm:$0xff]
        %v710 = vld [vmem:[%s183 + $0xf58] sm:$0xff]
        %v711 = vld [vmem:[%s183 + $0xf60] sm:$0xff]
        %v712 = vld [vmem:[%s183 + $0xf68] sm:$0xff]
        %v713 = vld [vmem:[%s183 + $0xf70] sm:$0xff]
        %v714 = vld [vmem:[%s183 + $0xf78] sm:$0xff]
        %v715 = vld [vmem:[%s183 + $0xf80] sm:$0xff]
        %v716 = vld [vmem:[%s183 + $0xf88] sm:$0xff]
        %v717 = vld [vmem:[%s183 + $0xf90] sm:$0xff]
        %v718 = vld [vmem:[%s183 + $0xf98] sm:$0xff]
        %v719 = vld [vmem:[%s183 + $0xfa0] sm:$0xff]
        %v720 = vld [vmem:[%s183 + $0xfa8] sm:$0xff]
        %v721 = vld [vmem:[%s183 + $0xfb0] sm:$0xff]
        %v722 = vld [vmem:[%s183 + $0xfb8] sm:$0xff]
        %v723 = vld [vmem:[%s183 + $0xfc0] sm:$0xff]
        %v724 = vld [vmem:[%s183 + $0xfc8] sm:$0xff]
        %v725 = vld [vmem:[%s183 + $0xfd0] sm:$0xff]
        %v726 = vld [vmem:[%s183 + $0xfd8] sm:$0xff]
        %v727 = vld [vmem:[%s183 + $0xfe0] sm:$0xff]
        %v728 = vld [vmem:[%s183 + $0xfe8] sm:$0xff]
        %v729 = vld [vmem:[%s183 + $0xff0] sm:$0xff]
        %v730 = vld [vmem:[%s183 + $0xff8] sm:$0xff]
        %v731 = vld [vmem:[%s183 + $0x1000] sm:$0xff]
        %v732 = vld [vmem:[%s183 + $0x1008] sm:$0xff]
        %v733 = vld [vmem:[%s183 + $0x1010] sm:$0xff]
        %v734 = vld [vmem:[%s183 + $0x1018] sm:$0xff]
        %v735 = vld [vmem:[%s183 + $0x1020] sm:$0xff]
        %v736 = vld [vmem:[%s183 + $0x1028] sm:$0xff]
        %v737 = vld [vmem:[%s183 + $0x1030] sm:$0xff]
        %v738 = vld [vmem:[%s183 + $0x1038] sm:$0xff]
        %v739 = vld [vmem:[%s183 + $0x1040] sm:$0xff]
        %v740 = vld [vmem:[%s183 + $0x1048] sm:$0xff]
        %v741 = vld [vmem:[%s183 + $0x1050] sm:$0xff]
        %v742 = vld [vmem:[%s183 + $0x1058] sm:$0xff]
        %v743 = vld [vmem:[%s183 + $0x1060] sm:$0xff]
        %v744 = vld [vmem:[%s183 + $0x1068] sm:$0xff]
        %v745 = vld [vmem:[%s183 + $0x1070] sm:$0xff]
        %v746 = vld [vmem:[%s183 + $0x1078] sm:$0xff]
        %v747 = vld [vmem:[%s183 + $0x1080] sm:$0xff]
        %v748 = vld [vmem:[%s183 + $0x1088] sm:$0xff]
        %v749 = vld [vmem:[%s183 + $0x1090] sm:$0xff]
        %v750 = vld [vmem:[%s183 + $0x1098] sm:$0xff]
        %v751 = vld [vmem:[%s183 + $0x10a0] sm:$0xff]
        %v752 = vld [vmem:[%s183 + $0x10a8] sm:$0xff]
        %v753 = vld [vmem:[%s183 + $0x10b0] sm:$0xff]
        %v754 = vld [vmem:[%s183 + $0x10b8] sm:$0xff]
        %v755 = vld [vmem:[%s183 + $0x10c0] sm:$0xff]
        %v756 = vld [vmem:[%s183 + $0x10c8] sm:$0xff]
        %v757 = vld [vmem:[%s183 + $0x10d0] sm:$0xff]
        %v758 = vld [vmem:[%s183 + $0x10d8] sm:$0xff]
        %v759 = vld [vmem:[%s183 + $0x10e0] sm:$0xff]
        %v760 = vld [vmem:[%s183 + $0x10e8] sm:$0xff]
        %v761 = vld [vmem:[%s183 + $0x10f0] sm:$0xff]
        %v762 = vld [vmem:[%s183 + $0x10f8] sm:$0xff]
        %v763 = vld [vmem:[%s183 + $0x1100] sm:$0xff]
        %v764 = vld [vmem:[%s183 + $0x1108] sm:$0xff]
        %v765 = vld [vmem:[%s183 + $0x1110] sm:$0xff]
        %v766 = vld [vmem:[%s183 + $0x1118] sm:$0xff]
        %v767 = vld [vmem:[%s183 + $0x1120] sm:$0xff]
        %v768 = vld [vmem:[%s183 + $0x1128] sm:$0xff]
        %v769 = vld [vmem:[%s183 + $0x1130] sm:$0xff]
        %v770 = vld [vmem:[%s183 + $0x1138] sm:$0xff]
        %v771 = vld [vmem:[%s183 + $0x1140] sm:$0xff]
        %v772 = vld [vmem:[%s183 + $0x1148] sm:$0xff]
        %v773 = vld [vmem:[%s183 + $0x1150] sm:$0xff]
        %v774 = vld [vmem:[%s183 + $0x1158] sm:$0xff]
        %v775 = vld [vmem:[%s183 + $0x1160] sm:$0xff]
        %v776 = vld [vmem:[%s183 + $0x1168] sm:$0xff]
        %v777 = vld [vmem:[%s183 + $0x1170] sm:$0xff]
        %v778 = vld [vmem:[%s183 + $0x1178] sm:$0xff]
        %v779 = vld [vmem:[%s183 + $0x1180] sm:$0xff]
        %v780 = vld [vmem:[%s183 + $0x1188] sm:$0xff]
        %v781 = vld [vmem:[%s183 + $0x1190] sm:$0xff]
        %v782 = vld [vmem:[%s183 + $0x1198] sm:$0xff]
        %v783 = vld [vmem:[%s183 + $0x11a0] sm:$0xff]
        %v784 = vld [vmem:[%s183 + $0x11a8] sm:$0xff]
        %v785 = vld [vmem:[%s183 + $0x11b0] sm:$0xff]
        %v786 = vld [vmem:[%s183 + $0x11b8] sm:$0xff]
        %v787 = vld [vmem:[%s183 + $0x11c0] sm:$0xff]
        %v788 = vld [vmem:[%s183 + $0x11c8] sm:$0xff]
        %v789 = vld [vmem:[%s183 + $0x11d0] sm:$0xff]
        %v790 = vld [vmem:[%s183 + $0x11d8] sm:$0xff]
        %v791 = vld [vmem:[%s183 + $0x11e0] sm:$0xff]
        %v792 = vld [vmem:[%s183 + $0x11e8] sm:$0xff]
        %v793 = vld [vmem:[%s183 + $0x11f0] sm:$0xff]
        %v794 = vld [vmem:[%s183 + $0x11f8] sm:$0xff]
        %v795 = vld [vmem:[%s183 + $0x1200] sm:$0xff]
        %v796 = vld [vmem:[%s183 + $0x1208] sm:$0xff]
        %v797 = vld [vmem:[%s183 + $0x1210] sm:$0xff]
        %v798 = vld [vmem:[%s183 + $0x1218] sm:$0xff]
        %v799 = vld [vmem:[%s183 + $0x1220] sm:$0xff]
        %v800 = vld [vmem:[%s183 + $0x1228] sm:$0xff]
        %v801 = vld [vmem:[%s183 + $0x1230] sm:$0xff]
        %v802 = vld [vmem:[%s183 + $0x1238] sm:$0xff]
        %v803 = vld [vmem:[%s183 + $0x1240] sm:$0xff]
        %v804 = vld [vmem:[%s183 + $0x1248] sm:$0xff]
        %v805 = vld [vmem:[%s183 + $0x1250] sm:$0xff]
        %v806 = vld [vmem:[%s183 + $0x1258] sm:$0xff]
        %v807 = vld [vmem:[%s183 + $0x1260] sm:$0xff]
        %v808 = vld [vmem:[%s183 + $0x1268] sm:$0xff]
        %v809 = vld [vmem:[%s183 + $0x1270] sm:$0xff]
        %v810 = vld [vmem:[%s183 + $0x1278] sm:$0xff]
        %v811 = vld [vmem:[%s183 + $0x1280] sm:$0xff]
        %v812 = vld [vmem:[%s183 + $0x1288] sm:$0xff]
        %v813 = vld [vmem:[%s183 + $0x1290] sm:$0xff]
        %v814 = vld [vmem:[%s183 + $0x1298] sm:$0xff]
        %v815 = vld [vmem:[%s183 + $0x12a0] sm:$0xff]
        %v816 = vld [vmem:[%s183 + $0x12a8] sm:$0xff]
        %v817 = vld [vmem:[%s183 + $0x12b0] sm:$0xff]
        %v818 = vld [vmem:[%s183 + $0x12b8] sm:$0xff]
        %v819 = vld [vmem:[%s183 + $0x12c0] sm:$0xff]
        %v820 = vld [vmem:[%s183 + $0x12c8] sm:$0xff]
        %v821 = vld [vmem:[%s183 + $0x12d0] sm:$0xff]
        %v822 = vld [vmem:[%s183 + $0x12d8] sm:$0xff]
        %v823 = vld [vmem:[%s183 + $0x12e0] sm:$0xff]
        %v824 = vld [vmem:[%s183 + $0x12e8] sm:$0xff]
        %v825 = vld [vmem:[%s183 + $0x12f0] sm:$0xff]
        %v826 = vld [vmem:[%s183 + $0x12f8] sm:$0xff]
        %v827 = vld [vmem:[%s183 + $0x1300] sm:$0xff]
        %v828 = vld [vmem:[%s183 + $0x1308] sm:$0xff]
        %v829 = vld [vmem:[%s183 + $0x1310] sm:$0xff]
        %v830 = vld [vmem:[%s183 + $0x1318] sm:$0xff]
        %v831 = vld [vmem:[%s183 + $0x1320] sm:$0xff]
        %v832 = vld [vmem:[%s183 + $0x1328] sm:$0xff]
        %v833 = vld [vmem:[%s183 + $0x1330] sm:$0xff]
        %v834 = vld [vmem:[%s183 + $0x1338] sm:$0xff]
        %v835 = vld [vmem:[%s183 + $0x1340] sm:$0xff]
        %v836 = vld [vmem:[%s183 + $0x1348] sm:$0xff]
        %v837 = vld [vmem:[%s183 + $0x1350] sm:$0xff]
        %v838 = vld [vmem:[%s183 + $0x1358] sm:$0xff]
        %v839 = vld [vmem:[%s183 + $0x1360] sm:$0xff]
        %v840 = vld [vmem:[%s183 + $0x1368] sm:$0xff]
        %v841 = vld [vmem:[%s183 + $0x1370] sm:$0xff]
        %v842 = vld [vmem:[%s183 + $0x1378] sm:$0xff]
        %v843 = vld [vmem:[%s183 + $0x1380] sm:$0xff]
        %v844 = vld [vmem:[%s183 + $0x1388] sm:$0xff]
        %v845 = vld [vmem:[%s183 + $0x1390] sm:$0xff]
        %v846 = vld [vmem:[%s183 + $0x1398] sm:$0xff]
        %v847 = vld [vmem:[%s183 + $0x13a0] sm:$0xff]
        %v848 = vld [vmem:[%s183 + $0x13a8] sm:$0xff]
        %v849 = vld [vmem:[%s183 + $0x13b0] sm:$0xff]
        %v850 = vld [vmem:[%s183 + $0x13b8] sm:$0xff]
        %v851 = vld [vmem:[%s183 + $0x13c0] sm:$0xff]
        %v852 = vld [vmem:[%s183 + $0x13c8] sm:$0xff]
        %v853 = vld [vmem:[%s183 + $0x13d0] sm:$0xff]
        %v854 = vld [vmem:[%s183 + $0x13d8] sm:$0xff]
        %v855 = vld [vmem:[%s183 + $0x13e0] sm:$0xff]
        %v856 = vld [vmem:[%s183 + $0x13e8] sm:$0xff]
        %v857 = vld [vmem:[%s183 + $0x13f0] sm:$0xff]
        %v858 = vld [vmem:[%s183 + $0x13f8] sm:$0xff]
        %v859 = vld [vmem:[%s183 + $0x1400] sm:$0xff]
        %v860 = vld [vmem:[%s183 + $0x1408] sm:$0xff]
        %v861 = vld [vmem:[%s183 + $0x1410] sm:$0xff]
        %v862 = vld [vmem:[%s183 + $0x1418] sm:$0xff]
        %v863 = vld [vmem:[%s183 + $0x1420] sm:$0xff]
        %v864 = vld [vmem:[%s183 + $0x1428] sm:$0xff]
        %v865 = vld [vmem:[%s183 + $0x1430] sm:$0xff]
        %v866 = vld [vmem:[%s183 + $0x1438] sm:$0xff]
        %v867 = vld [vmem:[%s183 + $0x1440] sm:$0xff]
        %v868 = vld [vmem:[%s183 + $0x1448] sm:$0xff]
        %v869 = vld [vmem:[%s183 + $0x1450] sm:$0xff]
        %v870 = vld [vmem:[%s183 + $0x1458] sm:$0xff]
        %v871 = vld [vmem:[%s183 + $0x1460] sm:$0xff]
        %v872 = vld [vmem:[%s183 + $0x1468] sm:$0xff]
        %v873 = vld [vmem:[%s183 + $0x1470] sm:$0xff]
        %v874 = vld [vmem:[%s183 + $0x1478] sm:$0xff]
        %v875 = vld [vmem:[%s183 + $0x1480] sm:$0xff]
        %v876 = vld [vmem:[%s183 + $0x1488] sm:$0xff]
        %v877 = vld [vmem:[%s183 + $0x1490] sm:$0xff]
        %v878 = vld [vmem:[%s183 + $0x1498] sm:$0xff]
        %v879 = vld [vmem:[%s183 + $0x14a0] sm:$0xff]
        %v880 = vld [vmem:[%s183 + $0x14a8] sm:$0xff]
        %v881 = vld [vmem:[%s183 + $0x14b0] sm:$0xff]
        %v882 = vld [vmem:[%s183 + $0x14b8] sm:$0xff]
        %v883 = vld [vmem:[%s183 + $0x14c0] sm:$0xff]
        %v884 = vld [vmem:[%s183 + $0x14c8] sm:$0xff]
        %v885 = vld [vmem:[%s183 + $0x14d0] sm:$0xff]
        %v886 = vld [vmem:[%s183 + $0x14d8] sm:$0xff]
        %v887 = vld [vmem:[%s183 + $0x14e0] sm:$0xff]
        %v888 = vld [vmem:[%s183 + $0x14e8] sm:$0xff]
        %v889 = vld [vmem:[%s183 + $0x14f0] sm:$0xff]
        %v890 = vld [vmem:[%s183 + $0x14f8] sm:$0xff]
        %v891 = vld [vmem:[%s183 + $0x1500] sm:$0xff]
        %v892 = vld [vmem:[%s183 + $0x1508] sm:$0xff]
        %v893 = vld [vmem:[%s183 + $0x1510] sm:$0xff]
        %v894 = vld [vmem:[%s183 + $0x1518] sm:$0xff]
        %v895 = vld [vmem:[%s183 + $0x1520] sm:$0xff]
        %v896 = vld [vmem:[%s183 + $0x1528] sm:$0xff]
        %v897 = vld [vmem:[%s183 + $0x1530] sm:$0xff]
        %v898 = vld [vmem:[%s183 + $0x1538] sm:$0xff]
        %v899 = vld [vmem:[%s183 + $0x1540] sm:$0xff]
        %v900 = vld [vmem:[%s183 + $0x1548] sm:$0xff]
        %v901 = vld [vmem:[%s183 + $0x1550] sm:$0xff]
        %v902 = vld [vmem:[%s183 + $0x1558] sm:$0xff]
        %v903 = vld [vmem:[%s183 + $0x1560] sm:$0xff]
        %v904 = vld [vmem:[%s183 + $0x1568] sm:$0xff]
        %v905 = vld [vmem:[%s183 + $0x1570] sm:$0xff]
        %v906 = vld [vmem:[%s183 + $0x1578] sm:$0xff]
        %v907 = vld [vmem:[%s183 + $0x1580] sm:$0xff]
        %v908 = vld [vmem:[%s183 + $0x1588] sm:$0xff]
        %v909 = vld [vmem:[%s183 + $0x1590] sm:$0xff]
        %v910 = vld [vmem:[%s183 + $0x1598] sm:$0xff]
        %v911 = vld [vmem:[%s183 + $0x15a0] sm:$0xff]
        %v912 = vld [vmem:[%s183 + $0x15a8] sm:$0xff]
        %v913 = vld [vmem:[%s183 + $0x15b0] sm:$0xff]
        %v914 = vld [vmem:[%s183 + $0x15b8] sm:$0xff]
        %v915 = vld [vmem:[%s183 + $0x15c0] sm:$0xff]
        %v916 = vld [vmem:[%s183 + $0x15c8] sm:$0xff]
        %v917 = vld [vmem:[%s183 + $0x15d0] sm:$0xff]
        %v918 = vld [vmem:[%s183 + $0x15d8] sm:$0xff]
        %v919 = vld [vmem:[%s183 + $0x15e0] sm:$0xff]
        %v920 = vld [vmem:[%s183 + $0x15e8] sm:$0xff]
        %v921 = vld [vmem:[%s183 + $0x15f0] sm:$0xff]
        %v922 = vld [vmem:[%s183 + $0x15f8] sm:$0xff]
        %v923 = vld [vmem:[%s183 + $0x1600] sm:$0xff]
        %v924 = vld [vmem:[%s183 + $0x1608] sm:$0xff]
        %v925 = vld [vmem:[%s183 + $0x1610] sm:$0xff]
        %v926 = vld [vmem:[%s183 + $0x1618] sm:$0xff]
        %v927 = vld [vmem:[%s183 + $0x1620] sm:$0xff]
        %v928 = vld [vmem:[%s183 + $0x1628] sm:$0xff]
        %v929 = vld [vmem:[%s183 + $0x1630] sm:$0xff]
        %v930 = vld [vmem:[%s183 + $0x1638] sm:$0xff]
        %v931 = vld [vmem:[%s183 + $0x1640] sm:$0xff]
        %v932 = vld [vmem:[%s183 + $0x1648] sm:$0xff]
        %v933 = vld [vmem:[%s183 + $0x1650] sm:$0xff]
        %v934 = vld [vmem:[%s183 + $0x1658] sm:$0xff]
        %v935 = vld [vmem:[%s183 + $0x1660] sm:$0xff]
        %v936 = vld [vmem:[%s183 + $0x1668] sm:$0xff]
        %v937 = vld [vmem:[%s183 + $0x1670] sm:$0xff]
        %v938 = vld [vmem:[%s183 + $0x1678] sm:$0xff]
        %v939 = vld [vmem:[%s183 + $0x1680] sm:$0xff]
        %v940 = vld [vmem:[%s183 + $0x1688] sm:$0xff]
        %v941 = vld [vmem:[%s183 + $0x1690] sm:$0xff]
        %v942 = vld [vmem:[%s183 + $0x1698] sm:$0xff]
        %v943 = vld [vmem:[%s183 + $0x16a0] sm:$0xff]
        %v944 = vld [vmem:[%s183 + $0x16a8] sm:$0xff]
        %v945 = vld [vmem:[%s183 + $0x16b0] sm:$0xff]
        %v946 = vld [vmem:[%s183 + $0x16b8] sm:$0xff]
        %v947 = vld [vmem:[%s183 + $0x16c0] sm:$0xff]
        %v948 = vld [vmem:[%s183 + $0x16c8] sm:$0xff]
        %v949 = vld [vmem:[%s183 + $0x16d0] sm:$0xff]
        %v950 = vld [vmem:[%s183 + $0x16d8] sm:$0xff]
        %v951 = vld [vmem:[%s183 + $0x16e0] sm:$0xff]
        %v952 = vld [vmem:[%s183 + $0x16e8] sm:$0xff]
        %v953 = vld [vmem:[%s183 + $0x16f0] sm:$0xff]
        %v954 = vld [vmem:[%s183 + $0x16f8] sm:$0xff]
        %955 = vmatpush.xpose.msra.mxu0 %v249
        %956 = vmatpush.xpose.msra.mxu0 %v247
        %957 = vmatpush.xpose.msra.mxu0 %v245
        %958 = vmatpush.xpose.msra.mxu0 %v243
        %959 = vmatpush.xpose.msra.mxu0 %v241
        %960 = vmatpush.xpose.msra.mxu0 %v239
        %961 = vmatpush.xpose.msra.mxu0 %v237
        %962 = vmatpush.xpose.msra.mxu0 %v235
        %963 = vmatpush.xpose.msra.mxu0 %v233
        %964 = vmatpush.xpose.msra.mxu0 %v231
        %965 = vmatpush.xpose.msra.mxu0 %v229
        %966 = vmatpush.xpose.msra.mxu0 %v227
        %967 = vmatpush.xpose.msra.mxu0 %v225
        %968 = vmatpush.xpose.msra.mxu0 %v223
        %969 = vmatpush.xpose.msra.mxu0 %v221
        %970 = vmatpush.xpose.msra.mxu0 %v219
        %971 = vmatmul.f32.gmra.mxu0 %v217
        %v972 = vpop.f32.mrf.mxu0
        %v973 = vadd.f32 0.0, %v972
        %974 = vdwg.mxu0
        %975 = vmatpush.xpose.msra.mxu0 %v250
        %976 = vmatpush.xpose.msra.mxu0 %v248
        %977 = vmatpush.xpose.msra.mxu0 %v246
        %978 = vmatpush.xpose.msra.mxu0 %v244
        %979 = vmatpush.xpose.msra.mxu0 %v242
        %980 = vmatpush.xpose.msra.mxu0 %v240
        %981 = vmatpush.xpose.msra.mxu0 %v238
        %982 = vmatpush.xpose.msra.mxu0 %v236
        %983 = vmatpush.xpose.msra.mxu0 %v234
        %984 = vmatpush.xpose.msra.mxu0 %v232
        %985 = vmatpush.xpose.msra.mxu0 %v230
        %986 = vmatpush.xpose.msra.mxu0 %v228
        %987 = vmatpush.xpose.msra.mxu0 %v226
        %988 = vmatpush.xpose.msra.mxu0 %v224
        %989 = vmatpush.xpose.msra.mxu0 %v222
        %990 = vmatpush.xpose.msra.mxu0 %v220
        %991 = vmatmul.f32.gmra.mxu0 %v218
        %v992 = vpop.f32.mrf.mxu0
        %v993 = vadd.f32 %v973, %v992
        %994 = vdwg.mxu0
        %995 = vmatpush.xpose.msra.mxu0 %v281
        %996 = vmatpush.xpose.msra.mxu0 %v279
        %997 = vmatpush.xpose.msra.mxu0 %v277
        %998 = vmatpush.xpose.msra.mxu0 %v275
        %999 = vmatpush.xpose.msra.mxu0 %v273
        %1000 = vmatpush.xpose.msra.mxu0 %v271
        %1001 = vmatpush.xpose.msra.mxu0 %v269
        %1002 = vmatpush.xpose.msra.mxu0 %v267
        %1003 = vmatpush.xpose.msra.mxu0 %v265
        %1004 = vmatpush.xpose.msra.mxu0 %v263
        %1005 = vmatpush.xpose.msra.mxu0 %v261
        %1006 = vmatpush.xpose.msra.mxu0 %v259
        %1007 = vmatpush.xpose.msra.mxu0 %v257
        %1008 = vmatpush.xpose.msra.mxu0 %v255
        %1009 = vmatpush.xpose.msra.mxu0 %v253
        %1010 = vmatpush.xpose.msra.mxu0 %v251
        %1011 = vmatmul.f32.gmra.mxu0 %v217
        %v1012 = vpop.f32.mrf.mxu0
        %v1013 = vadd.f32 0.0, %v1012
        %1014 = vdwg.mxu0
        %1015 = vmatpush.xpose.msra.mxu0 %v282
        %1016 = vmatpush.xpose.msra.mxu0 %v280
        %1017 = vmatpush.xpose.msra.mxu0 %v278
        %1018 = vmatpush.xpose.msra.mxu0 %v276
        %1019 = vmatpush.xpose.msra.mxu0 %v274
        %1020 = vmatpush.xpose.msra.mxu0 %v272
        %1021 = vmatpush.xpose.msra.mxu0 %v270
        %1022 = vmatpush.xpose.msra.mxu0 %v268
        %1023 = vmatpush.xpose.msra.mxu0 %v266
        %1024 = vmatpush.xpose.msra.mxu0 %v264
        %1025 = vmatpush.xpose.msra.mxu0 %v262
        %1026 = vmatpush.xpose.msra.mxu0 %v260
        %1027 = vmatpush.xpose.msra.mxu0 %v258
        %1028 = vmatpush.xpose.msra.mxu0 %v256
        %1029 = vmatpush.xpose.msra.mxu0 %v254
        %1030 = vmatpush.xpose.msra.mxu0 %v252
        %1031 = vmatmul.f32.gmra.mxu0 %v218
        %v1032 = vpop.f32.mrf.mxu0
        %v1033 = vadd.f32 %v1013, %v1032
        %1034 = vdwg.mxu0
        %1035 = vmatpush.xpose.msra.mxu0 %v313
        %1036 = vmatpush.xpose.msra.mxu0 %v311
        %1037 = vmatpush.xpose.msra.mxu0 %v309
        %1038 = vmatpush.xpose.msra.mxu0 %v307
        %1039 = vmatpush.xpose.msra.mxu0 %v305
        %1040 = vmatpush.xpose.msra.mxu0 %v303
        %1041 = vmatpush.xpose.msra.mxu0 %v301
        %1042 = vmatpush.xpose.msra.mxu0 %v299
        %1043 = vmatpush.xpose.msra.mxu0 %v297
        %1044 = vmatpush.xpose.msra.mxu0 %v295
        %1045 = vmatpush.xpose.msra.mxu0 %v293
        %1046 = vmatpush.xpose.msra.mxu0 %v291
        %1047 = vmatpush.xpose.msra.mxu0 %v289
        %1048 = vmatpush.xpose.msra.mxu0 %v287
        %1049 = vmatpush.xpose.msra.mxu0 %v285
        %1050 = vmatpush.xpose.msra.mxu0 %v283
        %1051 = vmatmul.f32.gmra.mxu0 %v217
        %v1052 = vpop.f32.mrf.mxu0
        %v1053 = vadd.f32 0.0, %v1052
        %1054 = vdwg.mxu0
        %1055 = vmatpush.xpose.msra.mxu0 %v314
        %1056 = vmatpush.xpose.msra.mxu0 %v312
        %1057 = vmatpush.xpose.msra.mxu0 %v310
        %1058 = vmatpush.xpose.msra.mxu0 %v308
        %1059 = vmatpush.xpose.msra.mxu0 %v306
        %1060 = vmatpush.xpose.msra.mxu0 %v304
        %1061 = vmatpush.xpose.msra.mxu0 %v302
        %1062 = vmatpush.xpose.msra.mxu0 %v300
        %1063 = vmatpush.xpose.msra.mxu0 %v298
        %1064 = vmatpush.xpose.msra.mxu0 %v296
        %1065 = vmatpush.xpose.msra.mxu0 %v294
        %1066 = vmatpush.xpose.msra.mxu0 %v292
        %1067 = vmatpush.xpose.msra.mxu0 %v290
        %1068 = vmatpush.xpose.msra.mxu0 %v288
        %1069 = vmatpush.xpose.msra.mxu0 %v286
        %1070 = vmatpush.xpose.msra.mxu0 %v284
        %1071 = vmatmul.f32.gmra.mxu0 %v218
        %v1072 = vpop.f32.mrf.mxu0
        %v1073 = vadd.f32 %v1053, %v1072
        %1074 = vdwg.mxu0
        %1075 = vmatpush.xpose.msra.mxu0 %v345
        %1076 = vmatpush.xpose.msra.mxu0 %v343
        %1077 = vmatpush.xpose.msra.mxu0 %v341
        %1078 = vmatpush.xpose.msra.mxu0 %v339
        %1079 = vmatpush.xpose.msra.mxu0 %v337
        %1080 = vmatpush.xpose.msra.mxu0 %v335
        %1081 = vmatpush.xpose.msra.mxu0 %v333
        %1082 = vmatpush.xpose.msra.mxu0 %v331
        %1083 = vmatpush.xpose.msra.mxu0 %v329
        %1084 = vmatpush.xpose.msra.mxu0 %v327
        %1085 = vmatpush.xpose.msra.mxu0 %v325
        %1086 = vmatpush.xpose.msra.mxu0 %v323
        %1087 = vmatpush.xpose.msra.mxu0 %v321
        %1088 = vmatpush.xpose.msra.mxu0 %v319
        %1089 = vmatpush.xpose.msra.mxu0 %v317
        %1090 = vmatpush.xpose.msra.mxu0 %v315
        %1091 = vmatmul.f32.gmra.mxu0 %v217
        %v1092 = vpop.f32.mrf.mxu0
        %v1093 = vadd.f32 0.0, %v1092
        %1094 = vdwg.mxu0
        %1095 = vmatpush.xpose.msra.mxu0 %v346
        %1096 = vmatpush.xpose.msra.mxu0 %v344
        %1097 = vmatpush.xpose.msra.mxu0 %v342
        %1098 = vmatpush.xpose.msra.mxu0 %v340
        %1099 = vmatpush.xpose.msra.mxu0 %v338
        %1100 = vmatpush.xpose.msra.mxu0 %v336
        %1101 = vmatpush.xpose.msra.mxu0 %v334
        %1102 = vmatpush.xpose.msra.mxu0 %v332
        %1103 = vmatpush.xpose.msra.mxu0 %v330
        %1104 = vmatpush.xpose.msra.mxu0 %v328
        %1105 = vmatpush.xpose.msra.mxu0 %v326
        %1106 = vmatpush.xpose.msra.mxu0 %v324
        %1107 = vmatpush.xpose.msra.mxu0 %v322
        %1108 = vmatpush.xpose.msra.mxu0 %v320
        %1109 = vmatpush.xpose.msra.mxu0 %v318
        %1110 = vmatpush.xpose.msra.mxu0 %v316
        %1111 = vmatmul.f32.gmra.mxu0 %v218
        %v1112 = vpop.f32.mrf.mxu0
        %v1113 = vadd.f32 %v1093, %v1112
        %1114 = vdwg.mxu0
        %1115 = vmatpush.xpose.msra.mxu0 %v377
        %1116 = vmatpush.xpose.msra.mxu0 %v375
        %1117 = vmatpush.xpose.msra.mxu0 %v373
        %1118 = vmatpush.xpose.msra.mxu0 %v371
        %1119 = vmatpush.xpose.msra.mxu0 %v369
        %1120 = vmatpush.xpose.msra.mxu0 %v367
        %1121 = vmatpush.xpose.msra.mxu0 %v365
        %1122 = vmatpush.xpose.msra.mxu0 %v363
        %1123 = vmatpush.xpose.msra.mxu0 %v361
        %1124 = vmatpush.xpose.msra.mxu0 %v359
        %1125 = vmatpush.xpose.msra.mxu0 %v357
        %1126 = vmatpush.xpose.msra.mxu0 %v355
        %1127 = vmatpush.xpose.msra.mxu0 %v353
        %1128 = vmatpush.xpose.msra.mxu0 %v351
        %1129 = vmatpush.xpose.msra.mxu0 %v349
        %1130 = vmatpush.xpose.msra.mxu0 %v347
        %1131 = vmatmul.f32.gmra.mxu0 %v217
        %v1132 = vpop.f32.mrf.mxu0
        %v1133 = vadd.f32 0.0, %v1132
        %1134 = vdwg.mxu0
        %1135 = vmatpush.xpose.msra.mxu0 %v378
        %1136 = vmatpush.xpose.msra.mxu0 %v376
        %1137 = vmatpush.xpose.msra.mxu0 %v374
        %1138 = vmatpush.xpose.msra.mxu0 %v372
        %1139 = vmatpush.xpose.msra.mxu0 %v370
        %1140 = vmatpush.xpose.msra.mxu0 %v368
        %1141 = vmatpush.xpose.msra.mxu0 %v366
        %1142 = vmatpush.xpose.msra.mxu0 %v364
        %1143 = vmatpush.xpose.msra.mxu0 %v362
        %1144 = vmatpush.xpose.msra.mxu0 %v360
        %1145 = vmatpush.xpose.msra.mxu0 %v358
        %1146 = vmatpush.xpose.msra.mxu0 %v356
        %1147 = vmatpush.xpose.msra.mxu0 %v354
        %1148 = vmatpush.xpose.msra.mxu0 %v352
        %1149 = vmatpush.xpose.msra.mxu0 %v350
        %1150 = vmatpush.xpose.msra.mxu0 %v348
        %1151 = vmatmul.f32.gmra.mxu0 %v218
        %v1152 = vpop.f32.mrf.mxu0
        %v1153 = vadd.f32 %v1133, %v1152
        %1154 = vdwg.mxu0
        %1155 = vmatpush.xpose.msra.mxu0 %v409
        %1156 = vmatpush.xpose.msra.mxu0 %v407
        %1157 = vmatpush.xpose.msra.mxu0 %v405
        %1158 = vmatpush.xpose.msra.mxu0 %v403
        %1159 = vmatpush.xpose.msra.mxu0 %v401
        %1160 = vmatpush.xpose.msra.mxu0 %v399
        %1161 = vmatpush.xpose.msra.mxu0 %v397
        %1162 = vmatpush.xpose.msra.mxu0 %v395
        %1163 = vmatpush.xpose.msra.mxu0 %v393
        %1164 = vmatpush.xpose.msra.mxu0 %v391
        %1165 = vmatpush.xpose.msra.mxu0 %v389
        %1166 = vmatpush.xpose.msra.mxu0 %v387
        %1167 = vmatpush.xpose.msra.mxu0 %v385
        %1168 = vmatpush.xpose.msra.mxu0 %v383
        %1169 = vmatpush.xpose.msra.mxu0 %v381
        %1170 = vmatpush.xpose.msra.mxu0 %v379
        %1171 = vmatmul.f32.gmra.mxu0 %v217
        %v1172 = vpop.f32.mrf.mxu0
        %v1173 = vadd.f32 0.0, %v1172
        %1174 = vdwg.mxu0
        %1175 = vmatpush.xpose.msra.mxu0 %v410
        %1176 = vmatpush.xpose.msra.mxu0 %v408
        %1177 = vmatpush.xpose.msra.mxu0 %v406
        %1178 = vmatpush.xpose.msra.mxu0 %v404
        %1179 = vmatpush.xpose.msra.mxu0 %v402
        %1180 = vmatpush.xpose.msra.mxu0 %v400
        %1181 = vmatpush.xpose.msra.mxu0 %v398
        %1182 = vmatpush.xpose.msra.mxu0 %v396
        %1183 = vmatpush.xpose.msra.mxu0 %v394
        %1184 = vmatpush.xpose.msra.mxu0 %v392
        %1185 = vmatpush.xpose.msra.mxu0 %v390
        %1186 = vmatpush.xpose.msra.mxu0 %v388
        %1187 = vmatpush.xpose.msra.mxu0 %v386
        %1188 = vmatpush.xpose.msra.mxu0 %v384
        %1189 = vmatpush.xpose.msra.mxu0 %v382
        %1190 = vmatpush.xpose.msra.mxu0 %v380
        %1191 = vmatmul.f32.gmra.mxu0 %v218
        %v1192 = vpop.f32.mrf.mxu0
        %v1193 = vadd.f32 %v1173, %v1192
        %1194 = vdwg.mxu0
        %1195 = vmatpush.xpose.msra.mxu0 %v441
        %1196 = vmatpush.xpose.msra.mxu0 %v439
        %1197 = vmatpush.xpose.msra.mxu0 %v437
        %1198 = vmatpush.xpose.msra.mxu0 %v435
        %1199 = vmatpush.xpose.msra.mxu0 %v433
        %1200 = vmatpush.xpose.msra.mxu0 %v431
        %1201 = vmatpush.xpose.msra.mxu0 %v429
        %1202 = vmatpush.xpose.msra.mxu0 %v427
        %1203 = vmatpush.xpose.msra.mxu0 %v425
        %1204 = vmatpush.xpose.msra.mxu0 %v423
        %1205 = vmatpush.xpose.msra.mxu0 %v421
        %1206 = vmatpush.xpose.msra.mxu0 %v419
        %1207 = vmatpush.xpose.msra.mxu0 %v417
        %1208 = vmatpush.xpose.msra.mxu0 %v415
        %1209 = vmatpush.xpose.msra.mxu0 %v413
        %1210 = vmatpush.xpose.msra.mxu0 %v411
        %1211 = vmatmul.f32.gmra.mxu0 %v217
        %v1212 = vpop.f32.mrf.mxu0
        %v1213 = vadd.f32 0.0, %v1212
        %1214 = vdwg.mxu0
        %1215 = vmatpush.xpose.msra.mxu0 %v442
        %1216 = vmatpush.xpose.msra.mxu0 %v440
        %1217 = vmatpush.xpose.msra.mxu0 %v438
        %1218 = vmatpush.xpose.msra.mxu0 %v436
        %1219 = vmatpush.xpose.msra.mxu0 %v434
        %1220 = vmatpush.xpose.msra.mxu0 %v432
        %1221 = vmatpush.xpose.msra.mxu0 %v430
        %1222 = vmatpush.xpose.msra.mxu0 %v428
        %1223 = vmatpush.xpose.msra.mxu0 %v426
        %1224 = vmatpush.xpose.msra.mxu0 %v424
        %1225 = vmatpush.xpose.msra.mxu0 %v422
        %1226 = vmatpush.xpose.msra.mxu0 %v420
        %1227 = vmatpush.xpose.msra.mxu0 %v418
        %1228 = vmatpush.xpose.msra.mxu0 %v416
        %1229 = vmatpush.xpose.msra.mxu0 %v414
        %1230 = vmatpush.xpose.msra.mxu0 %v412
        %1231 = vmatmul.f32.gmra.mxu0 %v218
        %v1232 = vpop.f32.mrf.mxu0
        %v1233 = vadd.f32 %v1213, %v1232
        %1234 = vdwg.mxu0
        %1235 = vmatpush.xpose.msra.mxu0 %v473
        %1236 = vmatpush.xpose.msra.mxu0 %v471
        %1237 = vmatpush.xpose.msra.mxu0 %v469
        %1238 = vmatpush.xpose.msra.mxu0 %v467
        %1239 = vmatpush.xpose.msra.mxu0 %v465
        %1240 = vmatpush.xpose.msra.mxu0 %v463
        %1241 = vmatpush.xpose.msra.mxu0 %v461
        %1242 = vmatpush.xpose.msra.mxu0 %v459
        %1243 = vmatpush.xpose.msra.mxu0 %v457
        %1244 = vmatpush.xpose.msra.mxu0 %v455
        %1245 = vmatpush.xpose.msra.mxu0 %v453
        %1246 = vmatpush.xpose.msra.mxu0 %v451
        %1247 = vmatpush.xpose.msra.mxu0 %v449
        %1248 = vmatpush.xpose.msra.mxu0 %v447
        %1249 = vmatpush.xpose.msra.mxu0 %v445
        %1250 = vmatpush.xpose.msra.mxu0 %v443
        %1251 = vmatmul.f32.gmra.mxu0 %v217
        %v1252 = vpop.f32.mrf.mxu0
        %v1253 = vadd.f32 0.0, %v1252
        %1254 = vdwg.mxu0
        %1255 = vmatpush.xpose.msra.mxu0 %v474
        %1256 = vmatpush.xpose.msra.mxu0 %v472
        %1257 = vmatpush.xpose.msra.mxu0 %v470
        %1258 = vmatpush.xpose.msra.mxu0 %v468
        %1259 = vmatpush.xpose.msra.mxu0 %v466
        %1260 = vmatpush.xpose.msra.mxu0 %v464
        %1261 = vmatpush.xpose.msra.mxu0 %v462
        %1262 = vmatpush.xpose.msra.mxu0 %v460
        %1263 = vmatpush.xpose.msra.mxu0 %v458
        %1264 = vmatpush.xpose.msra.mxu0 %v456
        %1265 = vmatpush.xpose.msra.mxu0 %v454
        %1266 = vmatpush.xpose.msra.mxu0 %v452
        %1267 = vmatpush.xpose.msra.mxu0 %v450
        %1268 = vmatpush.xpose.msra.mxu0 %v448
        %1269 = vmatpush.xpose.msra.mxu0 %v446
        %1270 = vmatpush.xpose.msra.mxu0 %v444
        %1271 = vmatmul.f32.gmra.mxu0 %v218
        %v1272 = vpop.f32.mrf.mxu0
        %v1273 = vadd.f32 %v1253, %v1272
        %1274 = vdwg.mxu0
        %1275 = vmatpush.xpose.msra.mxu0 %v505
        %1276 = vmatpush.xpose.msra.mxu0 %v503
        %1277 = vmatpush.xpose.msra.mxu0 %v501
        %1278 = vmatpush.xpose.msra.mxu0 %v499
        %1279 = vmatpush.xpose.msra.mxu0 %v497
        %1280 = vmatpush.xpose.msra.mxu0 %v495
        %1281 = vmatpush.xpose.msra.mxu0 %v493
        %1282 = vmatpush.xpose.msra.mxu0 %v491
        %1283 = vmatpush.xpose.msra.mxu0 %v489
        %1284 = vmatpush.xpose.msra.mxu0 %v487
        %1285 = vmatpush.xpose.msra.mxu0 %v485
        %1286 = vmatpush.xpose.msra.mxu0 %v483
        %1287 = vmatpush.xpose.msra.mxu0 %v481
        %1288 = vmatpush.xpose.msra.mxu0 %v479
        %1289 = vmatpush.xpose.msra.mxu0 %v477
        %1290 = vmatpush.xpose.msra.mxu0 %v475
        %1291 = vmatmul.f32.gmra.mxu0 %v217
        %v1292 = vpop.f32.mrf.mxu0
        %v1293 = vadd.f32 0.0, %v1292
        %1294 = vdwg.mxu0
        %1295 = vmatpush.xpose.msra.mxu0 %v506
        %1296 = vmatpush.xpose.msra.mxu0 %v504
        %1297 = vmatpush.xpose.msra.mxu0 %v502
        %1298 = vmatpush.xpose.msra.mxu0 %v500
        %1299 = vmatpush.xpose.msra.mxu0 %v498
        %1300 = vmatpush.xpose.msra.mxu0 %v496
        %1301 = vmatpush.xpose.msra.mxu0 %v494
        %1302 = vmatpush.xpose.msra.mxu0 %v492
        %1303 = vmatpush.xpose.msra.mxu0 %v490
        %1304 = vmatpush.xpose.msra.mxu0 %v488
        %1305 = vmatpush.xpose.msra.mxu0 %v486
        %1306 = vmatpush.xpose.msra.mxu0 %v484
        %1307 = vmatpush.xpose.msra.mxu0 %v482
        %1308 = vmatpush.xpose.msra.mxu0 %v480
        %1309 = vmatpush.xpose.msra.mxu0 %v478
        %1310 = vmatpush.xpose.msra.mxu0 %v476
        %1311 = vmatmul.f32.gmra.mxu0 %v218
        %v1312 = vpop.f32.mrf.mxu0
        %v1313 = vadd.f32 %v1293, %v1312
        %1314 = vdwg.mxu0
        %1315 = vmatpush.xpose.msra.mxu0 %v537
        %1316 = vmatpush.xpose.msra.mxu0 %v535
        %1317 = vmatpush.xpose.msra.mxu0 %v533
        %1318 = vmatpush.xpose.msra.mxu0 %v531
        %1319 = vmatpush.xpose.msra.mxu0 %v529
        %1320 = vmatpush.xpose.msra.mxu0 %v527
        %1321 = vmatpush.xpose.msra.mxu0 %v525
        %1322 = vmatpush.xpose.msra.mxu0 %v523
        %1323 = vmatpush.xpose.msra.mxu0 %v521
        %1324 = vmatpush.xpose.msra.mxu0 %v519
        %1325 = vmatpush.xpose.msra.mxu0 %v517
        %1326 = vmatpush.xpose.msra.mxu0 %v515
        %1327 = vmatpush.xpose.msra.mxu0 %v513
        %1328 = vmatpush.xpose.msra.mxu0 %v511
        %1329 = vmatpush.xpose.msra.mxu0 %v509
        %1330 = vmatpush.xpose.msra.mxu0 %v507
        %1331 = vmatmul.f32.gmra.mxu0 %v217
        %v1332 = vpop.f32.mrf.mxu0
        %v1333 = vadd.f32 0.0, %v1332
        %1334 = vdwg.mxu0
        %1335 = vmatpush.xpose.msra.mxu0 %v538
        %1336 = vmatpush.xpose.msra.mxu0 %v536
        %1337 = vmatpush.xpose.msra.mxu0 %v534
        %1338 = vmatpush.xpose.msra.mxu0 %v532
        %1339 = vmatpush.xpose.msra.mxu0 %v530
        %1340 = vmatpush.xpose.msra.mxu0 %v528
        %1341 = vmatpush.xpose.msra.mxu0 %v526
        %1342 = vmatpush.xpose.msra.mxu0 %v524
        %1343 = vmatpush.xpose.msra.mxu0 %v522
        %1344 = vmatpush.xpose.msra.mxu0 %v520
        %1345 = vmatpush.xpose.msra.mxu0 %v518
        %1346 = vmatpush.xpose.msra.mxu0 %v516
        %1347 = vmatpush.xpose.msra.mxu0 %v514
        %1348 = vmatpush.xpose.msra.mxu0 %v512
        %1349 = vmatpush.xpose.msra.mxu0 %v510
        %1350 = vmatpush.xpose.msra.mxu0 %v508
        %1351 = vmatmul.f32.gmra.mxu0 %v218
        %v1352 = vpop.f32.mrf.mxu0
        %v1353 = vadd.f32 %v1333, %v1352
        %1354 = vdwg.mxu0
        %1355 = vmatpush.xpose.msra.mxu0 %v569
        %1356 = vmatpush.xpose.msra.mxu0 %v567
        %1357 = vmatpush.xpose.msra.mxu0 %v565
        %1358 = vmatpush.xpose.msra.mxu0 %v563
        %1359 = vmatpush.xpose.msra.mxu0 %v561
        %1360 = vmatpush.xpose.msra.mxu0 %v559
        %1361 = vmatpush.xpose.msra.mxu0 %v557
        %1362 = vmatpush.xpose.msra.mxu0 %v555
        %1363 = vmatpush.xpose.msra.mxu0 %v553
        %1364 = vmatpush.xpose.msra.mxu0 %v551
        %1365 = vmatpush.xpose.msra.mxu0 %v549
        %1366 = vmatpush.xpose.msra.mxu0 %v547
        %1367 = vmatpush.xpose.msra.mxu0 %v545
        %1368 = vmatpush.xpose.msra.mxu0 %v543
        %1369 = vmatpush.xpose.msra.mxu0 %v541
        %1370 = vmatpush.xpose.msra.mxu0 %v539
        %1371 = vmatmul.f32.gmra.mxu0 %v217
        %v1372 = vpop.f32.mrf.mxu0
        %v1373 = vadd.f32 0.0, %v1372
        %1374 = vdwg.mxu0
        %1375 = vmatpush.xpose.msra.mxu0 %v570
        %1376 = vmatpush.xpose.msra.mxu0 %v568
        %1377 = vmatpush.xpose.msra.mxu0 %v566
        %1378 = vmatpush.xpose.msra.mxu0 %v564
        %1379 = vmatpush.xpose.msra.mxu0 %v562
        %1380 = vmatpush.xpose.msra.mxu0 %v560
        %1381 = vmatpush.xpose.msra.mxu0 %v558
        %1382 = vmatpush.xpose.msra.mxu0 %v556
        %1383 = vmatpush.xpose.msra.mxu0 %v554
        %1384 = vmatpush.xpose.msra.mxu0 %v552
        %1385 = vmatpush.xpose.msra.mxu0 %v550
        %1386 = vmatpush.xpose.msra.mxu0 %v548
        %1387 = vmatpush.xpose.msra.mxu0 %v546
        %1388 = vmatpush.xpose.msra.mxu0 %v544
        %1389 = vmatpush.xpose.msra.mxu0 %v542
        %1390 = vmatpush.xpose.msra.mxu0 %v540
        %1391 = vmatmul.f32.gmra.mxu0 %v218
        %v1392 = vpop.f32.mrf.mxu0
        %v1393 = vadd.f32 %v1373, %v1392
        %1394 = vdwg.mxu0
        %1395 = vmatpush.xpose.msra.mxu0 %v601
        %1396 = vmatpush.xpose.msra.mxu0 %v599
        %1397 = vmatpush.xpose.msra.mxu0 %v597
        %1398 = vmatpush.xpose.msra.mxu0 %v595
        %1399 = vmatpush.xpose.msra.mxu0 %v593
        %1400 = vmatpush.xpose.msra.mxu0 %v591
        %1401 = vmatpush.xpose.msra.mxu0 %v589
        %1402 = vmatpush.xpose.msra.mxu0 %v587
        %1403 = vmatpush.xpose.msra.mxu0 %v585
        %1404 = vmatpush.xpose.msra.mxu0 %v583
        %1405 = vmatpush.xpose.msra.mxu0 %v581
        %1406 = vmatpush.xpose.msra.mxu0 %v579
        %1407 = vmatpush.xpose.msra.mxu0 %v577
        %1408 = vmatpush.xpose.msra.mxu0 %v575
        %1409 = vmatpush.xpose.msra.mxu0 %v573
        %1410 = vmatpush.xpose.msra.mxu0 %v571
        %1411 = vmatmul.f32.gmra.mxu0 %v217
        %v1412 = vpop.f32.mrf.mxu0
        %v1413 = vadd.f32 0.0, %v1412
        %1414 = vdwg.mxu0
        %1415 = vmatpush.xpose.msra.mxu0 %v602
        %1416 = vmatpush.xpose.msra.mxu0 %v600
        %1417 = vmatpush.xpose.msra.mxu0 %v598
        %1418 = vmatpush.xpose.msra.mxu0 %v596
        %1419 = vmatpush.xpose.msra.mxu0 %v594
        %1420 = vmatpush.xpose.msra.mxu0 %v592
        %1421 = vmatpush.xpose.msra.mxu0 %v590
        %1422 = vmatpush.xpose.msra.mxu0 %v588
        %1423 = vmatpush.xpose.msra.mxu0 %v586
        %1424 = vmatpush.xpose.msra.mxu0 %v584
        %1425 = vmatpush.xpose.msra.mxu0 %v582
        %1426 = vmatpush.xpose.msra.mxu0 %v580
        %1427 = vmatpush.xpose.msra.mxu0 %v578
        %1428 = vmatpush.xpose.msra.mxu0 %v576
        %1429 = vmatpush.xpose.msra.mxu0 %v574
        %1430 = vmatpush.xpose.msra.mxu0 %v572
        %1431 = vmatmul.f32.gmra.mxu0 %v218
        %v1432 = vpop.f32.mrf.mxu0
        %v1433 = vadd.f32 %v1413, %v1432
        %1434 = vdwg.mxu0
        %1435 = vmatpush.xpose.msra.mxu0 %v633
        %1436 = vmatpush.xpose.msra.mxu0 %v631
        %1437 = vmatpush.xpose.msra.mxu0 %v629
        %1438 = vmatpush.xpose.msra.mxu0 %v627
        %1439 = vmatpush.xpose.msra.mxu0 %v625
        %1440 = vmatpush.xpose.msra.mxu0 %v623
        %1441 = vmatpush.xpose.msra.mxu0 %v621
        %1442 = vmatpush.xpose.msra.mxu0 %v619
        %1443 = vmatpush.xpose.msra.mxu0 %v617
        %1444 = vmatpush.xpose.msra.mxu0 %v615
        %1445 = vmatpush.xpose.msra.mxu0 %v613
        %1446 = vmatpush.xpose.msra.mxu0 %v611
        %1447 = vmatpush.xpose.msra.mxu0 %v609
        %1448 = vmatpush.xpose.msra.mxu0 %v607
        %1449 = vmatpush.xpose.msra.mxu0 %v605
        %1450 = vmatpush.xpose.msra.mxu0 %v603
        %1451 = vmatmul.f32.gmra.mxu0 %v217
        %v1452 = vpop.f32.mrf.mxu0
        %v1453 = vadd.f32 0.0, %v1452
        %1454 = vdwg.mxu0
        %1455 = vmatpush.xpose.msra.mxu0 %v634
        %1456 = vmatpush.xpose.msra.mxu0 %v632
        %1457 = vmatpush.xpose.msra.mxu0 %v630
        %1458 = vmatpush.xpose.msra.mxu0 %v628
        %1459 = vmatpush.xpose.msra.mxu0 %v626
        %1460 = vmatpush.xpose.msra.mxu0 %v624
        %1461 = vmatpush.xpose.msra.mxu0 %v622
        %1462 = vmatpush.xpose.msra.mxu0 %v620
        %1463 = vmatpush.xpose.msra.mxu0 %v618
        %1464 = vmatpush.xpose.msra.mxu0 %v616
        %1465 = vmatpush.xpose.msra.mxu0 %v614
        %1466 = vmatpush.xpose.msra.mxu0 %v612
        %1467 = vmatpush.xpose.msra.mxu0 %v610
        %1468 = vmatpush.xpose.msra.mxu0 %v608
        %1469 = vmatpush.xpose.msra.mxu0 %v606
        %1470 = vmatpush.xpose.msra.mxu0 %v604
        %1471 = vmatmul.f32.gmra.mxu0 %v218
        %v1472 = vpop.f32.mrf.mxu0
        %v1473 = vadd.f32 %v1453, %v1472
        %1474 = vdwg.mxu0
        %1475 = vmatpush.xpose.msra.mxu0 %v665
        %1476 = vmatpush.xpose.msra.mxu0 %v663
        %1477 = vmatpush.xpose.msra.mxu0 %v661
        %1478 = vmatpush.xpose.msra.mxu0 %v659
        %1479 = vmatpush.xpose.msra.mxu0 %v657
        %1480 = vmatpush.xpose.msra.mxu0 %v655
        %1481 = vmatpush.xpose.msra.mxu0 %v653
        %1482 = vmatpush.xpose.msra.mxu0 %v651
        %1483 = vmatpush.xpose.msra.mxu0 %v649
        %1484 = vmatpush.xpose.msra.mxu0 %v647
        %1485 = vmatpush.xpose.msra.mxu0 %v645
        %1486 = vmatpush.xpose.msra.mxu0 %v643
        %1487 = vmatpush.xpose.msra.mxu0 %v641
        %1488 = vmatpush.xpose.msra.mxu0 %v639
        %1489 = vmatpush.xpose.msra.mxu0 %v637
        %1490 = vmatpush.xpose.msra.mxu0 %v635
        %1491 = vmatmul.f32.gmra.mxu0 %v217
        %v1492 = vpop.f32.mrf.mxu0
        %v1493 = vadd.f32 0.0, %v1492
        %1494 = vdwg.mxu0
        %1495 = vmatpush.xpose.msra.mxu0 %v666
        %1496 = vmatpush.xpose.msra.mxu0 %v664
        %1497 = vmatpush.xpose.msra.mxu0 %v662
        %1498 = vmatpush.xpose.msra.mxu0 %v660
        %1499 = vmatpush.xpose.msra.mxu0 %v658
        %1500 = vmatpush.xpose.msra.mxu0 %v656
        %1501 = vmatpush.xpose.msra.mxu0 %v654
        %1502 = vmatpush.xpose.msra.mxu0 %v652
        %1503 = vmatpush.xpose.msra.mxu0 %v650
        %1504 = vmatpush.xpose.msra.mxu0 %v648
        %1505 = vmatpush.xpose.msra.mxu0 %v646
        %1506 = vmatpush.xpose.msra.mxu0 %v644
        %1507 = vmatpush.xpose.msra.mxu0 %v642
        %1508 = vmatpush.xpose.msra.mxu0 %v640
        %1509 = vmatpush.xpose.msra.mxu0 %v638
        %1510 = vmatpush.xpose.msra.mxu0 %v636
        %1511 = vmatmul.f32.gmra.mxu0 %v218
        %v1512 = vpop.f32.mrf.mxu0
        %v1513 = vadd.f32 %v1493, %v1512
        %1514 = vdwg.mxu0
        %1515 = vmatpush.xpose.msra.mxu0 %v697
        %1516 = vmatpush.xpose.msra.mxu0 %v695
        %1517 = vmatpush.xpose.msra.mxu0 %v693
        %1518 = vmatpush.xpose.msra.mxu0 %v691
        %1519 = vmatpush.xpose.msra.mxu0 %v689
        %1520 = vmatpush.xpose.msra.mxu0 %v687
        %1521 = vmatpush.xpose.msra.mxu0 %v685
        %1522 = vmatpush.xpose.msra.mxu0 %v683
        %1523 = vmatpush.xpose.msra.mxu0 %v681
        %1524 = vmatpush.xpose.msra.mxu0 %v679
        %1525 = vmatpush.xpose.msra.mxu0 %v677
        %1526 = vmatpush.xpose.msra.mxu0 %v675
        %1527 = vmatpush.xpose.msra.mxu0 %v673
        %1528 = vmatpush.xpose.msra.mxu0 %v671
        %1529 = vmatpush.xpose.msra.mxu0 %v669
        %1530 = vmatpush.xpose.msra.mxu0 %v667
        %1531 = vmatmul.f32.gmra.mxu0 %v217
        %v1532 = vpop.f32.mrf.mxu0
        %v1533 = vadd.f32 0.0, %v1532
        %1534 = vdwg.mxu0
        %1535 = vmatpush.xpose.msra.mxu0 %v698
        %1536 = vmatpush.xpose.msra.mxu0 %v696
        %1537 = vmatpush.xpose.msra.mxu0 %v694
        %1538 = vmatpush.xpose.msra.mxu0 %v692
        %1539 = vmatpush.xpose.msra.mxu0 %v690
        %1540 = vmatpush.xpose.msra.mxu0 %v688
        %1541 = vmatpush.xpose.msra.mxu0 %v686
        %1542 = vmatpush.xpose.msra.mxu0 %v684
        %1543 = vmatpush.xpose.msra.mxu0 %v682
        %1544 = vmatpush.xpose.msra.mxu0 %v680
        %1545 = vmatpush.xpose.msra.mxu0 %v678
        %1546 = vmatpush.xpose.msra.mxu0 %v676
        %1547 = vmatpush.xpose.msra.mxu0 %v674
        %1548 = vmatpush.xpose.msra.mxu0 %v672
        %1549 = vmatpush.xpose.msra.mxu0 %v670
        %1550 = vmatpush.xpose.msra.mxu0 %v668
        %1551 = vmatmul.f32.gmra.mxu0 %v218
        %v1552 = vpop.f32.mrf.mxu0
        %v1553 = vadd.f32 %v1533, %v1552
        %1554 = vdwg.mxu0
        %1555 = vmatpush.xpose.msra.mxu0 %v729
        %1556 = vmatpush.xpose.msra.mxu0 %v727
        %1557 = vmatpush.xpose.msra.mxu0 %v725
        %1558 = vmatpush.xpose.msra.mxu0 %v723
        %1559 = vmatpush.xpose.msra.mxu0 %v721
        %1560 = vmatpush.xpose.msra.mxu0 %v719
        %1561 = vmatpush.xpose.msra.mxu0 %v717
        %1562 = vmatpush.xpose.msra.mxu0 %v715
        %1563 = vmatpush.xpose.msra.mxu0 %v713
        %1564 = vmatpush.xpose.msra.mxu0 %v711
        %1565 = vmatpush.xpose.msra.mxu0 %v709
        %1566 = vmatpush.xpose.msra.mxu0 %v707
        %1567 = vmatpush.xpose.msra.mxu0 %v705
        %1568 = vmatpush.xpose.msra.mxu0 %v703
        %1569 = vmatpush.xpose.msra.mxu0 %v701
        %1570 = vmatpush.xpose.msra.mxu0 %v699
        %1571 = vmatmul.f32.gmra.mxu0 %v217
        %v1572 = vpop.f32.mrf.mxu0
        %v1573 = vadd.f32 0.0, %v1572
        %1574 = vdwg.mxu0
        %1575 = vmatpush.xpose.msra.mxu0 %v730
        %1576 = vmatpush.xpose.msra.mxu0 %v728
        %1577 = vmatpush.xpose.msra.mxu0 %v726
        %1578 = vmatpush.xpose.msra.mxu0 %v724
        %1579 = vmatpush.xpose.msra.mxu0 %v722
        %1580 = vmatpush.xpose.msra.mxu0 %v720
        %1581 = vmatpush.xpose.msra.mxu0 %v718
        %1582 = vmatpush.xpose.msra.mxu0 %v716
        %1583 = vmatpush.xpose.msra.mxu0 %v714
        %1584 = vmatpush.xpose.msra.mxu0 %v712
        %1585 = vmatpush.xpose.msra.mxu0 %v710
        %1586 = vmatpush.xpose.msra.mxu0 %v708
        %1587 = vmatpush.xpose.msra.mxu0 %v706
        %1588 = vmatpush.xpose.msra.mxu0 %v704
        %1589 = vmatpush.xpose.msra.mxu0 %v702
        %1590 = vmatpush.xpose.msra.mxu0 %v700
        %1591 = vmatmul.f32.gmra.mxu0 %v218
        %v1592 = vpop.f32.mrf.mxu0
        %v1593 = vadd.f32 %v1573, %v1592
        %1594 = vdwg.mxu0
        %1595 = vmatpush.xpose.msra.mxu0 %v761
        %1596 = vmatpush.xpose.msra.mxu0 %v759
        %1597 = vmatpush.xpose.msra.mxu0 %v757
        %1598 = vmatpush.xpose.msra.mxu0 %v755
        %1599 = vmatpush.xpose.msra.mxu0 %v753
        %1600 = vmatpush.xpose.msra.mxu0 %v751
        %1601 = vmatpush.xpose.msra.mxu0 %v749
        %1602 = vmatpush.xpose.msra.mxu0 %v747
        %1603 = vmatpush.xpose.msra.mxu0 %v745
        %1604 = vmatpush.xpose.msra.mxu0 %v743
        %1605 = vmatpush.xpose.msra.mxu0 %v741
        %1606 = vmatpush.xpose.msra.mxu0 %v739
        %1607 = vmatpush.xpose.msra.mxu0 %v737
        %1608 = vmatpush.xpose.msra.mxu0 %v735
        %1609 = vmatpush.xpose.msra.mxu0 %v733
        %1610 = vmatpush.xpose.msra.mxu0 %v731
        %1611 = vmatmul.f32.gmra.mxu0 %v217
        %v1612 = vpop.f32.mrf.mxu0
        %v1613 = vadd.f32 0.0, %v1612
        %1614 = vdwg.mxu0
        %1615 = vmatpush.xpose.msra.mxu0 %v762
        %1616 = vmatpush.xpose.msra.mxu0 %v760
        %1617 = vmatpush.xpose.msra.mxu0 %v758
        %1618 = vmatpush.xpose.msra.mxu0 %v756
        %1619 = vmatpush.xpose.msra.mxu0 %v754
        %1620 = vmatpush.xpose.msra.mxu0 %v752
        %1621 = vmatpush.xpose.msra.mxu0 %v750
        %1622 = vmatpush.xpose.msra.mxu0 %v748
        %1623 = vmatpush.xpose.msra.mxu0 %v746
        %1624 = vmatpush.xpose.msra.mxu0 %v744
        %1625 = vmatpush.xpose.msra.mxu0 %v742
        %1626 = vmatpush.xpose.msra.mxu0 %v740
        %1627 = vmatpush.xpose.msra.mxu0 %v738
        %1628 = vmatpush.xpose.msra.mxu0 %v736
        %1629 = vmatpush.xpose.msra.mxu0 %v734
        %1630 = vmatpush.xpose.msra.mxu0 %v732
        %1631 = vmatmul.f32.gmra.mxu0 %v218
        %v1632 = vpop.f32.mrf.mxu0
        %v1633 = vadd.f32 %v1613, %v1632
        %1634 = vdwg.mxu0
        %1635 = vmatpush.xpose.msra.mxu0 %v793
        %1636 = vmatpush.xpose.msra.mxu0 %v791
        %1637 = vmatpush.xpose.msra.mxu0 %v789
        %1638 = vmatpush.xpose.msra.mxu0 %v787
        %1639 = vmatpush.xpose.msra.mxu0 %v785
        %1640 = vmatpush.xpose.msra.mxu0 %v783
        %1641 = vmatpush.xpose.msra.mxu0 %v781
        %1642 = vmatpush.xpose.msra.mxu0 %v779
        %1643 = vmatpush.xpose.msra.mxu0 %v777
        %1644 = vmatpush.xpose.msra.mxu0 %v775
        %1645 = vmatpush.xpose.msra.mxu0 %v773
        %1646 = vmatpush.xpose.msra.mxu0 %v771
        %1647 = vmatpush.xpose.msra.mxu0 %v769
        %1648 = vmatpush.xpose.msra.mxu0 %v767
        %1649 = vmatpush.xpose.msra.mxu0 %v765
        %1650 = vmatpush.xpose.msra.mxu0 %v763
        %1651 = vmatmul.f32.gmra.mxu0 %v217
        %v1652 = vpop.f32.mrf.mxu0
        %v1653 = vadd.f32 0.0, %v1652
        %1654 = vdwg.mxu0
        %1655 = vmatpush.xpose.msra.mxu0 %v794
        %1656 = vmatpush.xpose.msra.mxu0 %v792
        %1657 = vmatpush.xpose.msra.mxu0 %v790
        %1658 = vmatpush.xpose.msra.mxu0 %v788
        %1659 = vmatpush.xpose.msra.mxu0 %v786
        %1660 = vmatpush.xpose.msra.mxu0 %v784
        %1661 = vmatpush.xpose.msra.mxu0 %v782
        %1662 = vmatpush.xpose.msra.mxu0 %v780
        %1663 = vmatpush.xpose.msra.mxu0 %v778
        %1664 = vmatpush.xpose.msra.mxu0 %v776
        %1665 = vmatpush.xpose.msra.mxu0 %v774
        %1666 = vmatpush.xpose.msra.mxu0 %v772
        %1667 = vmatpush.xpose.msra.mxu0 %v770
        %1668 = vmatpush.xpose.msra.mxu0 %v768
        %1669 = vmatpush.xpose.msra.mxu0 %v766
        %1670 = vmatpush.xpose.msra.mxu0 %v764
        %1671 = vmatmul.f32.gmra.mxu0 %v218
        %v1672 = vpop.f32.mrf.mxu0
        %v1673 = vadd.f32 %v1653, %v1672
        %1674 = vdwg.mxu0
        %1675 = vmatpush.xpose.msra.mxu0 %v825
        %1676 = vmatpush.xpose.msra.mxu0 %v823
        %1677 = vmatpush.xpose.msra.mxu0 %v821
        %1678 = vmatpush.xpose.msra.mxu0 %v819
        %1679 = vmatpush.xpose.msra.mxu0 %v817
        %1680 = vmatpush.xpose.msra.mxu0 %v815
        %1681 = vmatpush.xpose.msra.mxu0 %v813
        %1682 = vmatpush.xpose.msra.mxu0 %v811
        %1683 = vmatpush.xpose.msra.mxu0 %v809
        %1684 = vmatpush.xpose.msra.mxu0 %v807
        %1685 = vmatpush.xpose.msra.mxu0 %v805
        %1686 = vmatpush.xpose.msra.mxu0 %v803
        %1687 = vmatpush.xpose.msra.mxu0 %v801
        %1688 = vmatpush.xpose.msra.mxu0 %v799
        %1689 = vmatpush.xpose.msra.mxu0 %v797
        %1690 = vmatpush.xpose.msra.mxu0 %v795
        %1691 = vmatmul.f32.gmra.mxu0 %v217
        %v1692 = vpop.f32.mrf.mxu0
        %v1693 = vadd.f32 0.0, %v1692
        %1694 = vdwg.mxu0
        %1695 = vmatpush.xpose.msra.mxu0 %v826
        %1696 = vmatpush.xpose.msra.mxu0 %v824
        %1697 = vmatpush.xpose.msra.mxu0 %v822
        %1698 = vmatpush.xpose.msra.mxu0 %v820
        %1699 = vmatpush.xpose.msra.mxu0 %v818
        %1700 = vmatpush.xpose.msra.mxu0 %v816
        %1701 = vmatpush.xpose.msra.mxu0 %v814
        %1702 = vmatpush.xpose.msra.mxu0 %v812
        %1703 = vmatpush.xpose.msra.mxu0 %v810
        %1704 = vmatpush.xpose.msra.mxu0 %v808
        %1705 = vmatpush.xpose.msra.mxu0 %v806
        %1706 = vmatpush.xpose.msra.mxu0 %v804
        %1707 = vmatpush.xpose.msra.mxu0 %v802
        %1708 = vmatpush.xpose.msra.mxu0 %v800
        %1709 = vmatpush.xpose.msra.mxu0 %v798
        %1710 = vmatpush.xpose.msra.mxu0 %v796
        %1711 = vmatmul.f32.gmra.mxu0 %v218
        %v1712 = vpop.f32.mrf.mxu0
        %v1713 = vadd.f32 %v1693, %v1712
        %1714 = vdwg.mxu0
        %1715 = vmatpush.xpose.msra.mxu0 %v857
        %1716 = vmatpush.xpose.msra.mxu0 %v855
        %1717 = vmatpush.xpose.msra.mxu0 %v853
        %1718 = vmatpush.xpose.msra.mxu0 %v851
        %1719 = vmatpush.xpose.msra.mxu0 %v849
        %1720 = vmatpush.xpose.msra.mxu0 %v847
        %1721 = vmatpush.xpose.msra.mxu0 %v845
        %1722 = vmatpush.xpose.msra.mxu0 %v843
        %1723 = vmatpush.xpose.msra.mxu0 %v841
        %1724 = vmatpush.xpose.msra.mxu0 %v839
        %1725 = vmatpush.xpose.msra.mxu0 %v837
        %1726 = vmatpush.xpose.msra.mxu0 %v835
        %1727 = vmatpush.xpose.msra.mxu0 %v833
        %1728 = vmatpush.xpose.msra.mxu0 %v831
        %1729 = vmatpush.xpose.msra.mxu0 %v829
        %1730 = vmatpush.xpose.msra.mxu0 %v827
        %1731 = vmatmul.f32.gmra.mxu0 %v217
        %v1732 = vpop.f32.mrf.mxu0
        %v1733 = vadd.f32 0.0, %v1732
        %1734 = vdwg.mxu0
        %1735 = vmatpush.xpose.msra.mxu0 %v858
        %1736 = vmatpush.xpose.msra.mxu0 %v856
        %1737 = vmatpush.xpose.msra.mxu0 %v854
        %1738 = vmatpush.xpose.msra.mxu0 %v852
        %1739 = vmatpush.xpose.msra.mxu0 %v850
        %1740 = vmatpush.xpose.msra.mxu0 %v848
        %1741 = vmatpush.xpose.msra.mxu0 %v846
        %1742 = vmatpush.xpose.msra.mxu0 %v844
        %1743 = vmatpush.xpose.msra.mxu0 %v842
        %1744 = vmatpush.xpose.msra.mxu0 %v840
        %1745 = vmatpush.xpose.msra.mxu0 %v838
        %1746 = vmatpush.xpose.msra.mxu0 %v836
        %1747 = vmatpush.xpose.msra.mxu0 %v834
        %1748 = vmatpush.xpose.msra.mxu0 %v832
        %1749 = vmatpush.xpose.msra.mxu0 %v830
        %1750 = vmatpush.xpose.msra.mxu0 %v828
        %1751 = vmatmul.f32.gmra.mxu0 %v218
        %v1752 = vpop.f32.mrf.mxu0
        %v1753 = vadd.f32 %v1733, %v1752
        %1754 = vdwg.mxu0
        %1755 = vmatpush.xpose.msra.mxu0 %v889
        %1756 = vmatpush.xpose.msra.mxu0 %v887
        %1757 = vmatpush.xpose.msra.mxu0 %v885
        %1758 = vmatpush.xpose.msra.mxu0 %v883
        %1759 = vmatpush.xpose.msra.mxu0 %v881
        %1760 = vmatpush.xpose.msra.mxu0 %v879
        %1761 = vmatpush.xpose.msra.mxu0 %v877
        %1762 = vmatpush.xpose.msra.mxu0 %v875
        %1763 = vmatpush.xpose.msra.mxu0 %v873
        %1764 = vmatpush.xpose.msra.mxu0 %v871
        %1765 = vmatpush.xpose.msra.mxu0 %v869
        %1766 = vmatpush.xpose.msra.mxu0 %v867
        %1767 = vmatpush.xpose.msra.mxu0 %v865
        %1768 = vmatpush.xpose.msra.mxu0 %v863
        %1769 = vmatpush.xpose.msra.mxu0 %v861
        %1770 = vmatpush.xpose.msra.mxu0 %v859
        %1771 = vmatmul.f32.gmra.mxu0 %v217
        %v1772 = vpop.f32.mrf.mxu0
        %v1773 = vadd.f32 0.0, %v1772
        %1774 = vdwg.mxu0
        %1775 = vmatpush.xpose.msra.mxu0 %v890
        %1776 = vmatpush.xpose.msra.mxu0 %v888
        %1777 = vmatpush.xpose.msra.mxu0 %v886
        %1778 = vmatpush.xpose.msra.mxu0 %v884
        %1779 = vmatpush.xpose.msra.mxu0 %v882
        %1780 = vmatpush.xpose.msra.mxu0 %v880
        %1781 = vmatpush.xpose.msra.mxu0 %v878
        %1782 = vmatpush.xpose.msra.mxu0 %v876
        %1783 = vmatpush.xpose.msra.mxu0 %v874
        %1784 = vmatpush.xpose.msra.mxu0 %v872
        %1785 = vmatpush.xpose.msra.mxu0 %v870
        %1786 = vmatpush.xpose.msra.mxu0 %v868
        %1787 = vmatpush.xpose.msra.mxu0 %v866
        %1788 = vmatpush.xpose.msra.mxu0 %v864
        %1789 = vmatpush.xpose.msra.mxu0 %v862
        %1790 = vmatpush.xpose.msra.mxu0 %v860
        %1791 = vmatmul.f32.gmra.mxu0 %v218
        %v1792 = vpop.f32.mrf.mxu0
        %v1793 = vadd.f32 %v1773, %v1792
        %1794 = vdwg.mxu0
        %1795 = vmatpush.xpose.msra.mxu0 %v921
        %1796 = vmatpush.xpose.msra.mxu0 %v919
        %1797 = vmatpush.xpose.msra.mxu0 %v917
        %1798 = vmatpush.xpose.msra.mxu0 %v915
        %1799 = vmatpush.xpose.msra.mxu0 %v913
        %1800 = vmatpush.xpose.msra.mxu0 %v911
        %1801 = vmatpush.xpose.msra.mxu0 %v909
        %1802 = vmatpush.xpose.msra.mxu0 %v907
        %1803 = vmatpush.xpose.msra.mxu0 %v905
        %1804 = vmatpush.xpose.msra.mxu0 %v903
        %1805 = vmatpush.xpose.msra.mxu0 %v901
        %1806 = vmatpush.xpose.msra.mxu0 %v899
        %1807 = vmatpush.xpose.msra.mxu0 %v897
        %1808 = vmatpush.xpose.msra.mxu0 %v895
        %1809 = vmatpush.xpose.msra.mxu0 %v893
        %1810 = vmatpush.xpose.msra.mxu0 %v891
        %1811 = vmatmul.f32.gmra.mxu0 %v217
        %v1812 = vpop.f32.mrf.mxu0
        %v1813 = vadd.f32 0.0, %v1812
        %1814 = vdwg.mxu0
        %1815 = vmatpush.xpose.msra.mxu0 %v922
        %1816 = vmatpush.xpose.msra.mxu0 %v920
        %1817 = vmatpush.xpose.msra.mxu0 %v918
        %1818 = vmatpush.xpose.msra.mxu0 %v916
        %1819 = vmatpush.xpose.msra.mxu0 %v914
        %1820 = vmatpush.xpose.msra.mxu0 %v912
        %1821 = vmatpush.xpose.msra.mxu0 %v910
        %1822 = vmatpush.xpose.msra.mxu0 %v908
        %1823 = vmatpush.xpose.msra.mxu0 %v906
        %1824 = vmatpush.xpose.msra.mxu0 %v904
        %1825 = vmatpush.xpose.msra.mxu0 %v902
        %1826 = vmatpush.xpose.msra.mxu0 %v900
        %1827 = vmatpush.xpose.msra.mxu0 %v898
        %1828 = vmatpush.xpose.msra.mxu0 %v896
        %1829 = vmatpush.xpose.msra.mxu0 %v894
        %1830 = vmatpush.xpose.msra.mxu0 %v892
        %1831 = vmatmul.f32.gmra.mxu0 %v218
        %v1832 = vpop.f32.mrf.mxu0
        %v1833 = vadd.f32 %v1813, %v1832
        %1834 = vdwg.mxu0
        %1835 = vmatpush.xpose.msra.mxu0 %v953
        %1836 = vmatpush.xpose.msra.mxu0 %v951
        %1837 = vmatpush.xpose.msra.mxu0 %v949
        %1838 = vmatpush.xpose.msra.mxu0 %v947
        %1839 = vmatpush.xpose.msra.mxu0 %v945
        %1840 = vmatpush.xpose.msra.mxu0 %v943
        %1841 = vmatpush.xpose.msra.mxu0 %v941
        %1842 = vmatpush.xpose.msra.mxu0 %v939
        %1843 = vmatpush.xpose.msra.mxu0 %v937
        %1844 = vmatpush.xpose.msra.mxu0 %v935
        %1845 = vmatpush.xpose.msra.mxu0 %v933
        %1846 = vmatpush.xpose.msra.mxu0 %v931
        %1847 = vmatpush.xpose.msra.mxu0 %v929
        %1848 = vmatpush.xpose.msra.mxu0 %v927
        %1849 = vmatpush.xpose.msra.mxu0 %v925
        %1850 = vmatpush.xpose.msra.mxu0 %v923
        %1851 = vmatmul.f32.gmra.mxu0 %v217
        %v1852 = vpop.f32.mrf.mxu0
        %v1853 = vadd.f32 0.0, %v1852
        %1854 = vdwg.mxu0
        %1855 = vmatpush.xpose.msra.mxu0 %v954
        %1856 = vmatpush.xpose.msra.mxu0 %v952
        %1857 = vmatpush.xpose.msra.mxu0 %v950
        %1858 = vmatpush.xpose.msra.mxu0 %v948
        %1859 = vmatpush.xpose.msra.mxu0 %v946
        %1860 = vmatpush.xpose.msra.mxu0 %v944
        %1861 = vmatpush.xpose.msra.mxu0 %v942
        %1862 = vmatpush.xpose.msra.mxu0 %v940
        %1863 = vmatpush.xpose.msra.mxu0 %v938
        %1864 = vmatpush.xpose.msra.mxu0 %v936
        %1865 = vmatpush.xpose.msra.mxu0 %v934
        %1866 = vmatpush.xpose.msra.mxu0 %v932
        %1867 = vmatpush.xpose.msra.mxu0 %v930
        %1868 = vmatpush.xpose.msra.mxu0 %v928
        %1869 = vmatpush.xpose.msra.mxu0 %v926
        %1870 = vmatpush.xpose.msra.mxu0 %v924
        %1871 = vmatmul.f32.gmra.mxu0 %v218
        %v1872 = vpop.f32.mrf.mxu0
        %v1873 = vadd.f32 %v1853, %v1872
        %1874 = vdwg.mxu0
        %v1875 = vmul.f32 %v993, 0.35355338
        %v1876 = vmul.f32 %v1033, 0.35355338
        %v1877 = vmul.f32 %v1073, 0.35355338
        %v1878 = vmul.f32 %v1113, 0.35355338
        %v1879 = vmul.f32 %v1153, 0.35355338
        %v1880 = vmul.f32 %v1193, 0.35355338
        %v1881 = vmul.f32 %v1233, 0.35355338
        %v1882 = vmul.f32 %v1273, 0.35355338
        %v1883 = vmul.f32 %v1313, 0.35355338
        %v1884 = vmul.f32 %v1353, 0.35355338
        %v1885 = vmul.f32 %v1393, 0.35355338
        %v1886 = vmul.f32 %v1433, 0.35355338
        %v1887 = vmul.f32 %v1473, 0.35355338
        %v1888 = vmul.f32 %v1513, 0.35355338
        %v1889 = vmul.f32 %v1553, 0.35355338
        %v1890 = vmul.f32 %v1593, 0.35355338
        %v1891 = vmul.f32 %v1633, 0.35355338
        %v1892 = vmul.f32 %v1673, 0.35355338
        %v1893 = vmul.f32 %v1713, 0.35355338
        %v1894 = vmul.f32 %v1753, 0.35355338
        %v1895 = vmul.f32 %v1793, 0.35355338
        %v1896 = vmul.f32 %v1833, 0.35355338
        %v1897 = vmul.f32 %v1873, 0.35355338
        %1898 = vst [vmem:[%s209] sm:$0xff] %v1875
        %1899 = vst [vmem:[%s209 + $0x8] sm:$0xff] %v1876
        %1900 = vst [vmem:[%s209 + $0x10] sm:$0xff] %v1877
        %1901 = vst [vmem:[%s209 + $0x18] sm:$0xff] %v1878
        %1902 = vst [vmem:[%s209 + $0x20] sm:$0xff] %v1879
        %1903 = vst [vmem:[%s209 + $0x28] sm:$0xff] %v1880
        %1904 = vst [vmem:[%s209 + $0x30] sm:$0xff] %v1881
        %1905 = vst [vmem:[%s209 + $0x38] sm:$0xff] %v1882
        %1906 = vst [vmem:[%s209 + $0x40] sm:$0xff] %v1883
        %1907 = vst [vmem:[%s209 + $0x48] sm:$0xff] %v1884
        %1908 = vst [vmem:[%s209 + $0x50] sm:$0xff] %v1885
        %1909 = vst [vmem:[%s209 + $0x58] sm:$0xff] %v1886
        %1910 = vst [vmem:[%s209 + $0x60] sm:$0xff] %v1887
        %1911 = vst [vmem:[%s209 + $0x68] sm:$0xff] %v1888
        %1912 = vst [vmem:[%s209 + $0x70] sm:$0xff] %v1889
        %1913 = vst [vmem:[%s209 + $0x78] sm:$0xff] %v1890
        %1914 = vst [vmem:[%s209 + $0x80] sm:$0xff] %v1891
        %1915 = vst [vmem:[%s209 + $0x88] sm:$0xff] %v1892
        %1916 = vst [vmem:[%s209 + $0x90] sm:$0xff] %v1893
        %1917 = vst [vmem:[%s209 + $0x98] sm:$0xff] %v1894
        %1918 = vst [vmem:[%s209 + $0xa0] sm:$0xff] %v1895
        %1919 = vst [vmem:[%s209 + $0xa8] sm:$0xff] %v1896
        %1920 = vst [vmem:[%s209 + $0xb0] sm:$0xff] %v1897
        %s1921 = sand.u32 %s94, 1
        %s1922 = scalar_lea.sflag [#allocation4], %s1921
        %s1923 = sand.u32 %s94, 1
        %s1924 = smul.addr %s1923, 184
        %s1925 = scalar_lea.vmem [#allocation7], %s1924
        // Predicated region
        $region37: #{tpu_custom_call.1} parent=27 // pred_check
          %p1926 = pneg %p104
        $region38: #{tpu_custom_call.1} parent=27 // pred_check_branch
          %1928 = sbr.rel (%p1926) target = $region40
        $region39: #{tpu_custom_call.1} parent=27 // pred_region
          %s1929 = smul.u32 23, %s24
          %1931 = vsyncadd %s1922, 0
          %s1932 = smul.addr %s25, 46
          %s1933 = sadd.s32 %s1929, %s1932
          %s1934 = smul.addr %s1933, 8
          %s1935 = scalar_lea.hbm %s2, %s1934
          %s1937 = sshll.u32 %s1925, 4
          %s1938 = int_to_ptr.vmem [resolvable:$true] %s1937
          %s1939 = sshll.u32 %s1935, 4
          %s1940 = int_to_ptr.hbm [resolvable:$true] %s1939
          %1942 = dma.vmem_to_hbm [thread:$0]  %s1938, 2944, %s1940, %s1922
        $region40: #{tpu_custom_call.1} parent=27 // pred_fallthru
          _
      $region28: #{tpu_custom_call.1} parent=5 // pred_fallthru
        _
      %p1943 = scmp.le.s32.totalorder 2, %s15
      // Predicated region
      $region41: #{tpu_custom_call.1} parent=5 // pred_check
        %p1944 = pneg %p1943
      $region42: #{tpu_custom_call.1} parent=5 // pred_check_branch
        %1946 = sbr.rel (%p1944) target = $region44
      $region43: #{tpu_custom_call.1} parent=5 // pred_region
        %s1947 = ssub.s32 %s15, 2
        // Predicated region
        $region45: #{tpu_custom_call.1} parent=43 // pred_check
          %p1948 = pneg %p110
        $region46: #{tpu_custom_call.1} parent=43 // pred_check_branch
          %1950 = sbr.rel (%p1948) target = $region48
        $region47: #{tpu_custom_call.1} parent=43 // pred_region
          %s1951 = sand.u32 %s95, 1
          %s1952 = scalar_lea.sflag [#allocation4], %s1951
          %s1953 = sand.u32 %s95, 1
          %s1954 = smul.addr %s1953, 184
          %s1955 = scalar_lea.vmem [#allocation7], %s1954
          %1957 = dma.done %s1952, 2944
        $region48: #{tpu_custom_call.1} parent=43 // pred_fallthru
          _
      $region44: #{tpu_custom_call.1} parent=5 // pred_fallthru
        _
    $region6: #{tpu_custom_call.1} parent=1 // loop_footer
      %s19 = sadd.s32 1, %s15
    $region7: #{tpu_custom_call.1} parent=1 // loop_footer_branch
      %14 = sbr.rel target = $region3
    $region8: #{tpu_custom_call.1} parent=1 // loop_exit
      _
    %1958 = vsyncpa [#allocation3], 1
    %s1959 = scalar_lea.sflag [#allocation3], 1
    %1960 = vsyncpa %s1959, 1
    %1961 = vsyncpa [#allocation6], 1
    %1962 = vsyncpa [#allocation4], 1
    %s1963 = scalar_lea.sflag [#allocation4], 1
    %1964 = vsyncpa %s1963, 1

</llo_original>
